<compile_context>
chip_gen: v7x
topology: tpu7x:2x2x1
jax: 0.10.0
libtpu: 0.0.40
codegen_flags: <defaults>
</compile_context>

<pallas_src>
import numpy as np
import jax
import jax.numpy as jnp
from jax import lax
from jax.experimental import pallas as pl
from jax.experimental.pallas import tpu as pltpu


# ---------------------------------------------------------------------------
# Fused kernel: stacked Chebyshev matmul + per-k contraction + bias + ReLU
#               + FC + log_softmax
# ---------------------------------------------------------------------------
def _make_fused_kernel(K, N):
    def kernel(x_ref, p_ref, wfold_ref, bcb_ref, wfc2_ref, mask_ref,
               rrow_ref, rcol_ref, bfc_ref, o_ref, tx_ref):
        # x_ref    : [N, B*H]       node-major input stack, X[n, b*H+h] = x[b, n, h]
        # p_ref    : [K*N, N]       stacked Chebyshev polynomials [T_0; ...; T_{K-1}]
        # wfold_ref: [K, B*H, G*B]  per-k folded weight (Ct @ W_k, block-diag per batch)
        # bcb_ref  : [1, G*B]       conv bias tiled over batch (g-major, b-minor)
        # wfc2_ref : [N, G*C]       FC weight with node axis as rows
        # mask_ref : [G*B, G*C]     1 where row-g equals col-g'
        # rrow_ref : [B, G*B]       0/1 "pick batch b" selector
        # rcol_ref : [G*C, C]       0/1 "pick class c" selector
        # bfc_ref  : [1, C]         FC bias
        # o_ref    : [B, C]         log_softmax output
        # tx_ref   : [K*N, B*H]     VMEM scratch holding P @ X

        # --- one tall matmul replaces the serial Chebyshev recursion ---
        tx_ref[...] = jnp.dot(p_ref[...], x_ref[...],
                              preferred_element_type=jnp.float32)

        # --- K independent per-k contractions, accumulated (no concat) ---
        y = jnp.dot(tx_ref[pl.ds(0, N), :], wfold_ref[0],
                    preferred_element_type=jnp.float32)
        for k in range(1, K):                                  # static unroll
            y = y + jnp.dot(tx_ref[pl.ds(k * N, N), :], wfold_ref[k],
                            preferred_element_type=jnp.float32)
        y = jnp.maximum(y + bcb_ref[...], 0.0)                 # [N, G*B]

        # --- fused FC: contract node axis (axis 0) without materializing y.T ---
        V = lax.dot_general(y, wfc2_ref[...],
                            dimension_numbers=(((0,), (0,)), ((), ())),
                            preferred_element_type=jnp.float32)     # [G*B, G*C]
        Pm = V * mask_ref[...]
        t1 = jnp.dot(rrow_ref[...], Pm,
                     preferred_element_type=jnp.float32)            # [B, G*C]
        logits = jnp.dot(t1, rcol_ref[...],
                         preferred_element_type=jnp.float32) + bfc_ref[...]  # [B, C]

        # --- log_softmax(dim=1) ---
        m = jnp.max(logits, axis=1, keepdims=True)
        s = logits - m
        lse = jnp.log(jnp.sum(jnp.exp(s), axis=1, keepdims=True))
        o_ref[...] = s - lse

    return kernel


# ---------------------------------------------------------------------------
# One-time folding (hoisted out of the per-call forward)
# ---------------------------------------------------------------------------
def prepare_folded(Ct, Lr, Wg, bg, Wfc, bfc, B):
    K, H, G = Wg.shape
    N = Lr.shape[0]
    C = Wfc.shape[1]

    # Stacked Chebyshev polynomials of the rescaled Laplacian: [T_0; ...; T_{K-1}].
    I = jnp.eye(N, dtype=jnp.float32)
    Ts = [I]
    if K > 1:
        Ts.append(Lr)
        t_prev, t_cur = I, Lr
        for _ in range(2, K):
            t_next = 2.0 * jnp.dot(Lr, t_cur, precision='highest') - t_prev
            Ts.append(t_next)
            t_prev, t_cur = t_cur, t_next
    P = jnp.concatenate(Ts, axis=0).astype(jnp.float32)               # [K*N, N]

    # Fold the cos-DFT (== Re(FFT) for real input) into the Chebyshev weights.
    Wp = jnp.einsum('ab,kbg->kag', Ct, Wg, precision='highest')       # [K, H, G]
    # Per-k block-diag (over batch) folded weights: rows (b, h), cols (g, b').
    Wfold = jnp.einsum('khg,bc->kbhgc', Wp, jnp.eye(B, dtype=Wp.dtype),
                       precision='highest').reshape(K, B * H, G * B)
    bias_big = jnp.repeat(bg.reshape(-1), B).reshape(1, G * B)        # [1, G*B]

    # FC weight with the node axis as rows; constant selector matrices so the FC
    # needs no in-kernel reshape/transpose of the activation layout.
    Wfc2 = Wfc.reshape(N, G * C)                                      # [N, G*C]
    mask = jnp.kron(jnp.eye(G, dtype=jnp.float32),
                    jnp.ones((B, C), jnp.float32))                    # [G*B, G*C]
    Rrow = jnp.kron(jnp.ones((1, G), jnp.float32),
                    jnp.eye(B, dtype=jnp.float32))                    # [B, G*B]
    Rcol = jnp.kron(jnp.ones((G, 1), jnp.float32),
                    jnp.eye(C, dtype=jnp.float32))                    # [G*C, C]
    return (P, Wfold, bias_big, Wfc2, mask, Rrow, Rcol,
            bfc.reshape(1, C).astype(jnp.float32))


# ---------------------------------------------------------------------------
# Per-call forward: just the node-major restack + one pallas_call
# ---------------------------------------------------------------------------
def net_tgcn_forward(x, P, Wfold, bias_big, Wfc2, mask, Rrow, Rcol, bfc2):
    B, N, H = x.shape
    K = Wfold.shape[0]
    C = bfc2.shape[1]

    # Node-major input stack: X[n, b*H + h] = x[b, n, h].
    X = jnp.transpose(x, (1, 0, 2)).reshape(N, B * H).astype(jnp.float32)

    vmem = pl.BlockSpec(memory_space=pltpu.MemorySpace.VMEM)
    out = pl.pallas_call(
        _make_fused_kernel(K, N),
        out_shape=jax.ShapeDtypeStruct((B, C), jnp.float32),
        in_specs=[vmem] * 9,
        out_specs=vmem,
        scratch_shapes=[pltpu.VMEM((K * N, B * H), jnp.float32)],
    )(X, P, Wfold, bias_big, Wfc2, mask, Rrow, Rcol, bfc2)
    return out


# ---------------------------------------------------------------------------
# Pure-JAX/numpy reference (faithful to the PyTorch module, incl. CPU numpy FFT)
# ---------------------------------------------------------------------------
def reference_forward(x, Lr, Wg, bg, Wfc, bfc):
    xf = jnp.asarray(np.real(np.fft.fft(np.asarray(x), axis=2)), dtype=jnp.float32)
    K = Wg.shape[0]
    t_prev = xf
    y = jnp.einsum('bnh,hg->bng', t_prev, Wg[0], precision='highest')
    if K > 1:
        t_cur = jnp.einsum('nm,bmh->bnh', Lr, xf, precision='highest')
        y = y + jnp.einsum('bnh,hg->bng', t_cur, Wg[1], precision='highest')
        for k in range(2, K):
            t_next = (2.0 * jnp.einsum('nm,bmh->bnh', Lr, t_cur,
                                       precision='highest') - t_prev)
            y = y + jnp.einsum('bnh,hg->bng', t_next, Wg[k], precision='highest')
            t_prev, t_cur = t_cur, t_next
    y = jnp.maximum(y + bg.reshape(1, 1, -1), 0.0)
    logits = jnp.dot(y.reshape(x.shape[0], -1), Wfc, precision='highest') + bfc
    return jax.nn.log_softmax(logits, axis=1)


# ---------------------------------------------------------------------------
# Deterministic parameter / input construction
# ---------------------------------------------------------------------------
def _make_params_and_input():
    f1, g1, k1, h1 = 1, 15, 10, 12   # as in NetTGCN.__init__
    num_classes = 10
    B, N = 2, 64                     # small synthetic graph (N = L[0].shape[0])

    # Synthetic graph: ring adjacency -> symmetric normalized Laplacian,
    # rescaled with the standard lmax ~= 2 approximation: L~ = L - I.
    idx = jnp.arange(N)
    A = jnp.zeros((N, N), jnp.float32)
    A = A.at[idx, (idx + 1) % N].set(1.0)
    A = A.at[idx, (idx - 1) % N].set(1.0)
    dinv = 1.0 / jnp.sqrt(A.sum(axis=1))
    Lnorm = jnp.eye(N, dtype=jnp.float32) - (dinv[:, None] * A) * dinv[None, :]
    Lr = (Lnorm - jnp.eye(N, dtype=jnp.float32)).astype(jnp.float32)

    # cos-DFT matrix so that (x @ Ct)[n, h'] == Re(FFT(x[n, :]))[h'].
    t = jnp.arange(h1, dtype=jnp.float32)
    Ct = jnp.cos(2.0 * jnp.pi * jnp.outer(t, t) / h1).astype(jnp.float32)

    key = jax.random.PRNGKey(0)
    kw, kb, kfw, kfb, kx = jax.random.split(key, 5)
    Wg = (0.1 * jax.random.normal(kw, (k1, h1, g1))).astype(jnp.float32)     # [K,H,G]
    bg = (0.1 * jax.random.normal(kb, (1, g1))).astype(jnp.float32)          # [1,G]
    Wfc = (0.05 * jax.random.normal(kfw, (N * g1, num_classes))).astype(jnp.float32)
    bfc = (0.1 * jax.random.normal(kfb, (1, num_classes))).astype(jnp.float32)

    x = jax.random.normal(kx, (B, N, h1), dtype=jnp.float32)                 # [B,N,H]
    return x, Ct, Lr, Wg, bg, Wfc, bfc


if __name__ == "__main__":
    x, Ct, Lr, Wg, bg, Wfc, bfc = _make_params_and_input()

    # Fold weights ONCE (hoisted out of the per-call forward).
    folded = prepare_folded(Ct, Lr, Wg, bg, Wfc, bfc, B=x.shape[0])
    folded = tuple(jax.block_until_ready(t) for t in folded)

    fwd = jax.jit(net_tgcn_forward)
    out = jax.block_until_ready(fwd(x, *folded))

    assert out.shape == (2, 10)
    assert bool(jnp.all(jnp.isfinite(out)))
    # log_softmax rows should (approximately) exponentiate-sum to 1.
    assert bool(jnp.allclose(jnp.sum(jnp.exp(out), axis=1), 1.0, atol=1e-4))
    # Check against a straightforward JAX/numpy reference of the original forward.
    ref = reference_forward(x, Lr, Wg, bg, Wfc, bfc)
    assert bool(jnp.allclose(out, ref, atol=5e-2, rtol=5e-2))
    print("KERNEL_OK")
</pallas_src>

<mosaic_0001>
module attributes {stable_mosaic.version = 11 : i64} {
  func.func @kernel(%arg0: memref<64x24xf32, #tpu.memory_space<vmem>>, %arg1: memref<640x64xf32, #tpu.memory_space<vmem>>, %arg2: memref<10x24x30xf32, #tpu.memory_space<vmem>>, %arg3: memref<1x30xf32, #tpu.memory_space<vmem>>, %arg4: memref<64x150xf32, #tpu.memory_space<vmem>>, %arg5: memref<30x150xf32, #tpu.memory_space<vmem>>, %arg6: memref<2x30xf32, #tpu.memory_space<vmem>>, %arg7: memref<150x10xf32, #tpu.memory_space<vmem>>, %arg8: memref<1x10xf32, #tpu.memory_space<vmem>>, %arg9: memref<2x10xf32, #tpu.memory_space<vmem>>, %arg10: memref<640x24xf32, #tpu.memory_space<vmem>>) attributes {dimension_semantics = [], scalar_prefetch = 0 : i64, scratch_operands = 1 : i64, tpu.core_type = #tpu.core_type<tc>} {
    %c0 = arith.constant 0 : index
    %c0_0 = arith.constant 0 : index
    %0 = vector.load %arg1[%c0, %c0_0] : memref<640x64xf32, #tpu.memory_space<vmem>>, vector<640x64xf32>
    %c0_1 = arith.constant 0 : index
    %c0_2 = arith.constant 0 : index
    %1 = vector.load %arg0[%c0_1, %c0_2] : memref<64x24xf32, #tpu.memory_space<vmem>>, vector<64x24xf32>
    %cst = arith.constant dense<0.000000e+00> : vector<640x24xf32>
    %2 = tpu.matmul %0, %1, %cst {dimension_numbers = #tpu.dot_dimension_numbers<[1], [0], [0], [1], [0, 0, 1, 1], [], []>} : vector<640x64xf32>, vector<64x24xf32>, vector<640x24xf32> -> vector<640x24xf32>
    %c0_3 = arith.constant 0 : index
    %c0_4 = arith.constant 0 : index
    %3 = vector.load %arg10[%c0_3, %c0_4] : memref<640x24xf32, #tpu.memory_space<vmem>>, vector<640x24xf32>
    tpu.vector_store %arg10[%c0_3, %c0_4], %2 {strides = array<i32>} : memref<640x24xf32, #tpu.memory_space<vmem>>, vector<640x24xf32>,
    %c0_5 = arith.constant 0 : index
    %c0_6 = arith.constant 0 : index
    %4 = vector.load %arg10[%c0_5, %c0_6] : memref<640x24xf32, #tpu.memory_space<vmem>>, vector<64x24xf32>
    %c0_7 = arith.constant 0 : index
    %c0_8 = arith.constant 0 : index
    %c0_9 = arith.constant 0 : index
    %5 = vector.load %arg2[%c0_7, %c0_8, %c0_9] : memref<10x24x30xf32, #tpu.memory_space<vmem>>, vector<1x24x30xf32>
    %6 = vector.shape_cast %5 : vector<1x24x30xf32> to vector<24x30xf32>
    %cst_10 = arith.constant dense<0.000000e+00> : vector<64x30xf32>
    %7 = tpu.matmul %4, %6, %cst_10 {dimension_numbers = #tpu.dot_dimension_numbers<[1], [0], [0], [1], [0, 0, 1, 1], [], []>} : vector<64x24xf32>, vector<24x30xf32>, vector<64x30xf32> -> vector<64x30xf32>
    %c64 = arith.constant 64 : index
    %c0_11 = arith.constant 0 : index
    %8 = vector.load %arg10[%c64, %c0_11] : memref<640x24xf32, #tpu.memory_space<vmem>>, vector<64x24xf32>
    %c1 = arith.constant 1 : index
    %c0_12 = arith.constant 0 : index
    %c0_13 = arith.constant 0 : index
    %9 = vector.load %arg2[%c1, %c0_12, %c0_13] : memref<10x24x30xf32, #tpu.memory_space<vmem>>, vector<1x24x30xf32>
    %10 = vector.shape_cast %9 : vector<1x24x30xf32> to vector<24x30xf32>
    %cst_14 = arith.constant dense<0.000000e+00> : vector<64x30xf32>
    %11 = tpu.matmul %8, %10, %cst_14 {dimension_numbers = #tpu.dot_dimension_numbers<[1], [0], [0], [1], [0, 0, 1, 1], [], []>} : vector<64x24xf32>, vector<24x30xf32>, vector<64x30xf32> -> vector<64x30xf32>
    %12 = arith.addf %7, %11 : vector<64x30xf32>
    %c128 = arith.constant 128 : index
    %c0_15 = arith.constant 0 : index
    %13 = vector.load %arg10[%c128, %c0_15] : memref<640x24xf32, #tpu.memory_space<vmem>>, vector<64x24xf32>
    %c2 = arith.constant 2 : index
    %c0_16 = arith.constant 0 : index
    %c0_17 = arith.constant 0 : index
    %14 = vector.load %arg2[%c2, %c0_16, %c0_17] : memref<10x24x30xf32, #tpu.memory_space<vmem>>, vector<1x24x30xf32>
    %15 = vector.shape_cast %14 : vector<1x24x30xf32> to vector<24x30xf32>
    %cst_18 = arith.constant dense<0.000000e+00> : vector<64x30xf32>
    %16 = tpu.matmul %13, %15, %cst_18 {dimension_numbers = #tpu.dot_dimension_numbers<[1], [0], [0], [1], [0, 0, 1, 1], [], []>} : vector<64x24xf32>, vector<24x30xf32>, vector<64x30xf32> -> vector<64x30xf32>
    %17 = arith.addf %12, %16 : vector<64x30xf32>
    %c192 = arith.constant 192 : index
    %c0_19 = arith.constant 0 : index
    %18 = vector.load %arg10[%c192, %c0_19] : memref<640x24xf32, #tpu.memory_space<vmem>>, vector<64x24xf32>
    %c3 = arith.constant 3 : index
    %c0_20 = arith.constant 0 : index
    %c0_21 = arith.constant 0 : index
    %19 = vector.load %arg2[%c3, %c0_20, %c0_21] : memref<10x24x30xf32, #tpu.memory_space<vmem>>, vector<1x24x30xf32>
    %20 = vector.shape_cast %19 : vector<1x24x30xf32> to vector<24x30xf32>
    %cst_22 = arith.constant dense<0.000000e+00> : vector<64x30xf32>
    %21 = tpu.matmul %18, %20, %cst_22 {dimension_numbers = #tpu.dot_dimension_numbers<[1], [0], [0], [1], [0, 0, 1, 1], [], []>} : vector<64x24xf32>, vector<24x30xf32>, vector<64x30xf32> -> vector<64x30xf32>
    %22 = arith.addf %17, %21 : vector<64x30xf32>
    %c256 = arith.constant 256 : index
    %c0_23 = arith.constant 0 : index
    %23 = vector.load %arg10[%c256, %c0_23] : memref<640x24xf32, #tpu.memory_space<vmem>>, vector<64x24xf32>
    %c4 = arith.constant 4 : index
    %c0_24 = arith.constant 0 : index
    %c0_25 = arith.constant 0 : index
    %24 = vector.load %arg2[%c4, %c0_24, %c0_25] : memref<10x24x30xf32, #tpu.memory_space<vmem>>, vector<1x24x30xf32>
    %25 = vector.shape_cast %24 : vector<1x24x30xf32> to vector<24x30xf32>
    %cst_26 = arith.constant dense<0.000000e+00> : vector<64x30xf32>
    %26 = tpu.matmul %23, %25, %cst_26 {dimension_numbers = #tpu.dot_dimension_numbers<[1], [0], [0], [1], [0, 0, 1, 1], [], []>} : vector<64x24xf32>, vector<24x30xf32>, vector<64x30xf32> -> vector<64x30xf32>
    %27 = arith.addf %22, %26 : vector<64x30xf32>
    %c320 = arith.constant 320 : index
    %c0_27 = arith.constant 0 : index
    %28 = vector.load %arg10[%c320, %c0_27] : memref<640x24xf32, #tpu.memory_space<vmem>>, vector<64x24xf32>
    %c5 = arith.constant 5 : index
    %c0_28 = arith.constant 0 : index
    %c0_29 = arith.constant 0 : index
    %29 = vector.load %arg2[%c5, %c0_28, %c0_29] : memref<10x24x30xf32, #tpu.memory_space<vmem>>, vector<1x24x30xf32>
    %30 = vector.shape_cast %29 : vector<1x24x30xf32> to vector<24x30xf32>
    %cst_30 = arith.constant dense<0.000000e+00> : vector<64x30xf32>
    %31 = tpu.matmul %28, %30, %cst_30 {dimension_numbers = #tpu.dot_dimension_numbers<[1], [0], [0], [1], [0, 0, 1, 1], [], []>} : vector<64x24xf32>, vector<24x30xf32>, vector<64x30xf32> -> vector<64x30xf32>
    %32 = arith.addf %27, %31 : vector<64x30xf32>
    %c384 = arith.constant 384 : index
    %c0_31 = arith.constant 0 : index
    %33 = vector.load %arg10[%c384, %c0_31] : memref<640x24xf32, #tpu.memory_space<vmem>>, vector<64x24xf32>
    %c6 = arith.constant 6 : index
    %c0_32 = arith.constant 0 : index
    %c0_33 = arith.constant 0 : index
    %34 = vector.load %arg2[%c6, %c0_32, %c0_33] : memref<10x24x30xf32, #tpu.memory_space<vmem>>, vector<1x24x30xf32>
    %35 = vector.shape_cast %34 : vector<1x24x30xf32> to vector<24x30xf32>
    %cst_34 = arith.constant dense<0.000000e+00> : vector<64x30xf32>
    %36 = tpu.matmul %33, %35, %cst_34 {dimension_numbers = #tpu.dot_dimension_numbers<[1], [0], [0], [1], [0, 0, 1, 1], [], []>} : vector<64x24xf32>, vector<24x30xf32>, vector<64x30xf32> -> vector<64x30xf32>
    %37 = arith.addf %32, %36 : vector<64x30xf32>
    %c448 = arith.constant 448 : index
    %c0_35 = arith.constant 0 : index
    %38 = vector.load %arg10[%c448, %c0_35] : memref<640x24xf32, #tpu.memory_space<vmem>>, vector<64x24xf32>
    %c7 = arith.constant 7 : index
    %c0_36 = arith.constant 0 : index
    %c0_37 = arith.constant 0 : index
    %39 = vector.load %arg2[%c7, %c0_36, %c0_37] : memref<10x24x30xf32, #tpu.memory_space<vmem>>, vector<1x24x30xf32>
    %40 = vector.shape_cast %39 : vector<1x24x30xf32> to vector<24x30xf32>
    %cst_38 = arith.constant dense<0.000000e+00> : vector<64x30xf32>
    %41 = tpu.matmul %38, %40, %cst_38 {dimension_numbers = #tpu.dot_dimension_numbers<[1], [0], [0], [1], [0, 0, 1, 1], [], []>} : vector<64x24xf32>, vector<24x30xf32>, vector<64x30xf32> -> vector<64x30xf32>
    %42 = arith.addf %37, %41 : vector<64x30xf32>
    %c512 = arith.constant 512 : index
    %c0_39 = arith.constant 0 : index
    %43 = vector.load %arg10[%c512, %c0_39] : memref<640x24xf32, #tpu.memory_space<vmem>>, vector<64x24xf32>
    %c8 = arith.constant 8 : index
    %c0_40 = arith.constant 0 : index
    %c0_41 = arith.constant 0 : index
    %44 = vector.load %arg2[%c8, %c0_40, %c0_41] : memref<10x24x30xf32, #tpu.memory_space<vmem>>, vector<1x24x30xf32>
    %45 = vector.shape_cast %44 : vector<1x24x30xf32> to vector<24x30xf32>
    %cst_42 = arith.constant dense<0.000000e+00> : vector<64x30xf32>
    %46 = tpu.matmul %43, %45, %cst_42 {dimension_numbers = #tpu.dot_dimension_numbers<[1], [0], [0], [1], [0, 0, 1, 1], [], []>} : vector<64x24xf32>, vector<24x30xf32>, vector<64x30xf32> -> vector<64x30xf32>
    %47 = arith.addf %42, %46 : vector<64x30xf32>
    %c576 = arith.constant 576 : index
    %c0_43 = arith.constant 0 : index
    %48 = vector.load %arg10[%c576, %c0_43] : memref<640x24xf32, #tpu.memory_space<vmem>>, vector<64x24xf32>
    %c9 = arith.constant 9 : index
    %c0_44 = arith.constant 0 : index
    %c0_45 = arith.constant 0 : index
    %49 = vector.load %arg2[%c9, %c0_44, %c0_45] : memref<10x24x30xf32, #tpu.memory_space<vmem>>, vector<1x24x30xf32>
    %50 = vector.shape_cast %49 : vector<1x24x30xf32> to vector<24x30xf32>
    %cst_46 = arith.constant dense<0.000000e+00> : vector<64x30xf32>
    %51 = tpu.matmul %48, %50, %cst_46 {dimension_numbers = #tpu.dot_dimension_numbers<[1], [0], [0], [1], [0, 0, 1, 1], [], []>} : vector<64x24xf32>, vector<24x30xf32>, vector<64x30xf32> -> vector<64x30xf32>
    %52 = arith.addf %47, %51 : vector<64x30xf32>
    %c0_47 = arith.constant 0 : index
    %c0_48 = arith.constant 0 : index
    %53 = vector.load %arg3[%c0_47, %c0_48] : memref<1x30xf32, #tpu.memory_space<vmem>>, vector<1x30xf32>
    %54 = vector.broadcast %53 : vector<1x30xf32> to vector<64x30xf32>
    %55 = arith.addf %52, %54 : vector<64x30xf32>
    %cst_49 = arith.constant 0.000000e+00 : f32
    %56 = vector.broadcast %cst_49 : f32 to vector<64x30xf32>
    %57 = arith.maximumf %55, %56 : vector<64x30xf32>
    %c0_50 = arith.constant 0 : index
    %c0_51 = arith.constant 0 : index
    %58 = vector.load %arg4[%c0_50, %c0_51] : memref<64x150xf32, #tpu.memory_space<vmem>>, vector<64x150xf32>
    %cst_52 = arith.constant dense<0.000000e+00> : vector<30x150xf32>
    %59 = tpu.matmul %57, %58, %cst_52 {dimension_numbers = #tpu.dot_dimension_numbers<[0], [0], [1], [1], [0, 1, 1, 1], [], []>} : vector<64x30xf32>, vector<64x150xf32>, vector<30x150xf32> -> vector<30x150xf32>
    %c0_53 = arith.constant 0 : index
    %c0_54 = arith.constant 0 : index
    %60 = vector.load %arg5[%c0_53, %c0_54] : memref<30x150xf32, #tpu.memory_space<vmem>>, vector<30x150xf32>
    %61 = arith.mulf %59, %60 : vector<30x150xf32>
    %c0_55 = arith.constant 0 : index
    %c0_56 = arith.constant 0 : index
    %62 = vector.load %arg6[%c0_55, %c0_56] : memref<2x30xf32, #tpu.memory_space<vmem>>, vector<2x30xf32>
    %cst_57 = arith.constant dense<0.000000e+00> : vector<2x150xf32>
    %63 = tpu.matmul %62, %61, %cst_57 {dimension_numbers = #tpu.dot_dimension_numbers<[1], [0], [0], [1], [0, 0, 1, 1], [], []>} : vector<2x30xf32>, vector<30x150xf32>, vector<2x150xf32> -> vector<2x150xf32>
    %c0_58 = arith.constant 0 : index
    %c0_59 = arith.constant 0 : index
    %64 = vector.load %arg7[%c0_58, %c0_59] : memref<150x10xf32, #tpu.memory_space<vmem>>, vector<150x10xf32>
    %cst_60 = arith.constant dense<0.000000e+00> : vector<2x10xf32>
    %65 = tpu.matmul %63, %64, %cst_60 {dimension_numbers = #tpu.dot_dimension_numbers<[1], [0], [0], [1], [0, 0, 1, 1], [], []>} : vector<2x150xf32>, vector<150x10xf32>, vector<2x10xf32> -> vector<2x10xf32>
    %c0_61 = arith.constant 0 : index
    %c0_62 = arith.constant 0 : index
    %66 = vector.load %arg8[%c0_61, %c0_62] : memref<1x10xf32, #tpu.memory_space<vmem>>, vector<1x10xf32>
    %67 = vector.broadcast %66 : vector<1x10xf32> to vector<2x10xf32>
    %68 = arith.addf %65, %67 : vector<2x10xf32>
    %cst_63 = arith.constant dense<0xFF800000> : vector<2xf32>
    %69 = vector.multi_reduction <maximumf>, %68, %cst_63 [1] : vector<2x10xf32> to vector<2xf32>
    %70 = vector.shape_cast %69 : vector<2xf32> to vector<2x1xf32>
    %71 = vector.broadcast %70 : vector<2x1xf32> to vector<2x10xf32>
    %72 = arith.subf %68, %71 : vector<2x10xf32>
    %73 = math.exp %72 : vector<2x10xf32>
    %cst_64 = arith.constant dense<0.000000e+00> : vector<2xf32>
    %74 = vector.multi_reduction <add>, %73, %cst_64 [1] : vector<2x10xf32> to vector<2xf32>
    %75 = vector.shape_cast %74 : vector<2xf32> to vector<2x1xf32>
    %76 = math.log %75 : vector<2x1xf32>
    %77 = vector.broadcast %76 : vector<2x1xf32> to vector<2x10xf32>
    %78 = arith.subf %72, %77 : vector<2x10xf32>
    %c0_65 = arith.constant 0 : index
    %c0_66 = arith.constant 0 : index
    %79 = vector.load %arg9[%c0_65, %c0_66] : memref<2x10xf32, #tpu.memory_space<vmem>>, vector<2x10xf32>
    tpu.vector_store %arg9[%c0_65, %c0_66], %78 {strides = array<i32>} : memref<2x10xf32, #tpu.memory_space<vmem>>, vector<2x10xf32>,
    return
  }
}

</mosaic_0001>

<llo_original>
// kernel: net_tgcn_forward.1
$region0: #{net_tgcn_forward.1}
  #allocation0 [shape = 'u32[]', space=smem, size = 0x4, offset = 0x4, fixed_abs, tag = 'smem constant byte address 0x4 - core index']
  #allocation1 [shape = 'u32[144,128]{1,0:T(1,128)}', space=vmem, size = 0x12000, scoped, tag = 'internal scratch']
  #allocation2 [shape = 'f32[640,24]{1,0:T(8,128)}', space=vmem, size = 0x50000, scoped, tag = 'scratch operand']
  %s0 = inlined_call_operand.vmem [shape: f32[64,24], index: 0, kind: input, shape index: {}]
  %s1 = inlined_call_operand.vmem [shape: f32[640,64], index: 1, kind: input, shape index: {}]
  %s2 = inlined_call_operand.vmem [shape: f32[10,24,30], index: 2, kind: input, shape index: {}]
  %s3 = inlined_call_operand.vmem [shape: f32[1,30], index: 3, kind: input, shape index: {}]
  %s4 = inlined_call_operand.vmem [shape: f32[64,150], index: 4, kind: input, shape index: {}]
  %s5 = inlined_call_operand.vmem [shape: f32[30,150], index: 5, kind: input, shape index: {}]
  %s6 = inlined_call_operand.vmem [shape: f32[2,30], index: 6, kind: input, shape index: {}]
  %s7 = inlined_call_operand.vmem [shape: f32[150,10], index: 7, kind: input, shape index: {}]
  %s8 = inlined_call_operand.vmem [shape: f32[1,10], index: 8, kind: input, shape index: {}]
  %s9 = inlined_call_operand.hbm [shape: f32[2,10], index: 9, kind: output, shape index: {}]
  %s10 = sld [smem:[#allocation0]]
  $region46: #{net_tgcn_forward.1} parent=0
    _
  %s12 = ssub.s32 1, %s10
  %s13 = scalar_select 0, %s12, %s10
  $region1: #{net_tgcn_forward.1} parent=0
    #allocation3 [shape = 'u8[1024]{0}', space=vmem, size = 0x400, scoped, tag = 'output window, operand 0, single buffered']
    #allocation4 [shape = 's32[1]{0}', space=sflag, size = 0x4, scoped, tag = 'scoped memory for net_tgcn_forward.1']
    %14 = vsyncpa [#allocation4], 0
    // Predicated region
    $region2: #{net_tgcn_forward.1} parent=1 // pred_check
      _
    $region3: #{net_tgcn_forward.1} parent=1 // pred_check_branch
      %16 = sbr.rel (0) target = $region5
    $region4: #{net_tgcn_forward.1} parent=1 // pred_region
      _
    $region5: #{net_tgcn_forward.1} parent=1 // pred_fallthru
      _
    // Predicated region
    $region6: #{net_tgcn_forward.1} parent=1 // pred_check
      _
    $region7: #{net_tgcn_forward.1} parent=1 // pred_check_branch
      %18 = sbr.rel (0) target = $region9
    $region8: #{net_tgcn_forward.1} parent=1 // pred_region
      _
    $region9: #{net_tgcn_forward.1} parent=1 // pred_fallthru
      _
    // Predicated region
    $region10: #{net_tgcn_forward.1} parent=1 // pred_check
      _
    $region11: #{net_tgcn_forward.1} parent=1 // pred_check_branch
      %20 = sbr.rel (0) target = $region13
    $region12: #{net_tgcn_forward.1} parent=1 // pred_region
      _
    $region13: #{net_tgcn_forward.1} parent=1 // pred_fallthru
      _
    // Predicated region
    $region14: #{net_tgcn_forward.1} parent=1 // pred_check
      _
    $region15: #{net_tgcn_forward.1} parent=1 // pred_check_branch
      %22 = sbr.rel (0) target = $region17
    $region16: #{net_tgcn_forward.1} parent=1 // pred_region
      _
    $region17: #{net_tgcn_forward.1} parent=1 // pred_fallthru
      _
    // Predicated region
    $region18: #{net_tgcn_forward.1} parent=1 // pred_check
      _
    $region19: #{net_tgcn_forward.1} parent=1 // pred_check_branch
      %24 = sbr.rel (0) target = $region21
    $region20: #{net_tgcn_forward.1} parent=1 // pred_region
      _
    $region21: #{net_tgcn_forward.1} parent=1 // pred_fallthru
      _
    // Predicated region
    $region22: #{net_tgcn_forward.1} parent=1 // pred_check
      _
    $region23: #{net_tgcn_forward.1} parent=1 // pred_check_branch
      %26 = sbr.rel (0) target = $region25
    $region24: #{net_tgcn_forward.1} parent=1 // pred_region
      _
    $region25: #{net_tgcn_forward.1} parent=1 // pred_fallthru
      _
    // Predicated region
    $region26: #{net_tgcn_forward.1} parent=1 // pred_check
      _
    $region27: #{net_tgcn_forward.1} parent=1 // pred_check_branch
      %28 = sbr.rel (0) target = $region29
    $region28: #{net_tgcn_forward.1} parent=1 // pred_region
      _
    $region29: #{net_tgcn_forward.1} parent=1 // pred_fallthru
      _
    // Predicated region
    $region30: #{net_tgcn_forward.1} parent=1 // pred_check
      _
    $region31: #{net_tgcn_forward.1} parent=1 // pred_check_branch
      %30 = sbr.rel (0) target = $region33
    $region32: #{net_tgcn_forward.1} parent=1 // pred_region
      _
    $region33: #{net_tgcn_forward.1} parent=1 // pred_fallthru
      _
    // Predicated region
    $region34: #{net_tgcn_forward.1} parent=1 // pred_check
      _
    $region35: #{net_tgcn_forward.1} parent=1 // pred_check_branch
      %32 = sbr.rel (0) target = $region37
    $region36: #{net_tgcn_forward.1} parent=1 // pred_region
      _
    $region37: #{net_tgcn_forward.1} parent=1 // pred_fallthru
      _
    %v33 = vld [vmem:[%s1] sm:$0xff]
    %v34 = vld [vmem:[%s1 + $0x8] sm:$0xff]
    %v35 = vld [vmem:[%s1 + $0x10] sm:$0xff]
    %v36 = vld [vmem:[%s1 + $0x18] sm:$0xff]
    %v37 = vld [vmem:[%s1 + $0x20] sm:$0xff]
    %v38 = vld [vmem:[%s1 + $0x28] sm:$0xff]
    %v39 = vld [vmem:[%s1 + $0x30] sm:$0xff]
    %v40 = vld [vmem:[%s1 + $0x38] sm:$0xff]
    %v41 = vld [vmem:[%s1 + $0x40] sm:$0xff]
    %v42 = vld [vmem:[%s1 + $0x48] sm:$0xff]
    %v43 = vld [vmem:[%s1 + $0x50] sm:$0xff]
    %v44 = vld [vmem:[%s1 + $0x58] sm:$0xff]
    %v45 = vld [vmem:[%s1 + $0x60] sm:$0xff]
    %v46 = vld [vmem:[%s1 + $0x68] sm:$0xff]
    %v47 = vld [vmem:[%s1 + $0x70] sm:$0xff]
    %v48 = vld [vmem:[%s1 + $0x78] sm:$0xff]
    %v49 = vld [vmem:[%s1 + $0x80] sm:$0xff]
    %v50 = vld [vmem:[%s1 + $0x88] sm:$0xff]
    %v51 = vld [vmem:[%s1 + $0x90] sm:$0xff]
    %v52 = vld [vmem:[%s1 + $0x98] sm:$0xff]
    %v53 = vld [vmem:[%s1 + $0xa0] sm:$0xff]
    %v54 = vld [vmem:[%s1 + $0xa8] sm:$0xff]
    %v55 = vld [vmem:[%s1 + $0xb0] sm:$0xff]
    %v56 = vld [vmem:[%s1 + $0xb8] sm:$0xff]
    %v57 = vld [vmem:[%s1 + $0xc0] sm:$0xff]
    %v58 = vld [vmem:[%s1 + $0xc8] sm:$0xff]
    %v59 = vld [vmem:[%s1 + $0xd0] sm:$0xff]
    %v60 = vld [vmem:[%s1 + $0xd8] sm:$0xff]
    %v61 = vld [vmem:[%s1 + $0xe0] sm:$0xff]
    %v62 = vld [vmem:[%s1 + $0xe8] sm:$0xff]
    %v63 = vld [vmem:[%s1 + $0xf0] sm:$0xff]
    %v64 = vld [vmem:[%s1 + $0xf8] sm:$0xff]
    %v65 = vld [vmem:[%s1 + $0x100] sm:$0xff]
    %v66 = vld [vmem:[%s1 + $0x108] sm:$0xff]
    %v67 = vld [vmem:[%s1 + $0x110] sm:$0xff]
    %v68 = vld [vmem:[%s1 + $0x118] sm:$0xff]
    %v69 = vld [vmem:[%s1 + $0x120] sm:$0xff]
    %v70 = vld [vmem:[%s1 + $0x128] sm:$0xff]
    %v71 = vld [vmem:[%s1 + $0x130] sm:$0xff]
    %v72 = vld [vmem:[%s1 + $0x138] sm:$0xff]
    %v73 = vld [vmem:[%s1 + $0x140] sm:$0xff]
    %v74 = vld [vmem:[%s1 + $0x148] sm:$0xff]
    %v75 = vld [vmem:[%s1 + $0x150] sm:$0xff]
    %v76 = vld [vmem:[%s1 + $0x158] sm:$0xff]
    %v77 = vld [vmem:[%s1 + $0x160] sm:$0xff]
    %v78 = vld [vmem:[%s1 + $0x168] sm:$0xff]
    %v79 = vld [vmem:[%s1 + $0x170] sm:$0xff]
    %v80 = vld [vmem:[%s1 + $0x178] sm:$0xff]
    %v81 = vld [vmem:[%s1 + $0x180] sm:$0xff]
    %v82 = vld [vmem:[%s1 + $0x188] sm:$0xff]
    %v83 = vld [vmem:[%s1 + $0x190] sm:$0xff]
    %v84 = vld [vmem:[%s1 + $0x198] sm:$0xff]
    %v85 = vld [vmem:[%s1 + $0x1a0] sm:$0xff]
    %v86 = vld [vmem:[%s1 + $0x1a8] sm:$0xff]
    %v87 = vld [vmem:[%s1 + $0x1b0] sm:$0xff]
    %v88 = vld [vmem:[%s1 + $0x1b8] sm:$0xff]
    %v89 = vld [vmem:[%s1 + $0x1c0] sm:$0xff]
    %v90 = vld [vmem:[%s1 + $0x1c8] sm:$0xff]
    %v91 = vld [vmem:[%s1 + $0x1d0] sm:$0xff]
    %v92 = vld [vmem:[%s1 + $0x1d8] sm:$0xff]
    %v93 = vld [vmem:[%s1 + $0x1e0] sm:$0xff]
    %v94 = vld [vmem:[%s1 + $0x1e8] sm:$0xff]
    %v95 = vld [vmem:[%s1 + $0x1f0] sm:$0xff]
    %v96 = vld [vmem:[%s1 + $0x1f8] sm:$0xff]
    %v97 = vld [vmem:[%s1 + $0x200] sm:$0xff]
    %v98 = vld [vmem:[%s1 + $0x208] sm:$0xff]
    %v99 = vld [vmem:[%s1 + $0x210] sm:$0xff]
    %v100 = vld [vmem:[%s1 + $0x218] sm:$0xff]
    %v101 = vld [vmem:[%s1 + $0x220] sm:$0xff]
    %v102 = vld [vmem:[%s1 + $0x228] sm:$0xff]
    %v103 = vld [vmem:[%s1 + $0x230] sm:$0xff]
    %v104 = vld [vmem:[%s1 + $0x238] sm:$0xff]
    %v105 = vld [vmem:[%s1 + $0x240] sm:$0xff]
    %v106 = vld [vmem:[%s1 + $0x248] sm:$0xff]
    %v107 = vld [vmem:[%s1 + $0x250] sm:$0xff]
    %v108 = vld [vmem:[%s1 + $0x258] sm:$0xff]
    %v109 = vld [vmem:[%s1 + $0x260] sm:$0xff]
    %v110 = vld [vmem:[%s1 + $0x268] sm:$0xff]
    %v111 = vld [vmem:[%s1 + $0x270] sm:$0xff]
    %v112 = vld [vmem:[%s1 + $0x278] sm:$0xff]
    %v113 = vld [vmem:[%s0] sm:$0xff]
    %v114 = vld [vmem:[%s0 + $0x8] sm:$0xff]
    %v115 = vld [vmem:[%s0 + $0x10] sm:$0xff]
    %v116 = vld [vmem:[%s0 + $0x18] sm:$0xff]
    %v117 = vld [vmem:[%s0 + $0x20] sm:$0xff]
    %v118 = vld [vmem:[%s0 + $0x28] sm:$0xff]
    %v119 = vld [vmem:[%s0 + $0x30] sm:$0xff]
    %v120 = vld [vmem:[%s0 + $0x38] sm:$0xff]
    %vm121 = vcmask 523264
    %v123 = vsel %vm121, %v33, 0
    %v126 = vsel %vm121, %v34, 0
    %v129 = vsel %vm121, %v35, 0
    %v132 = vsel %vm121, %v36, 0
    %v135 = vsel %vm121, %v37, 0
    %v138 = vsel %vm121, %v38, 0
    %v141 = vsel %vm121, %v39, 0
    %v144 = vsel %vm121, %v40, 0
    %v147 = vsel %vm121, %v41, 0
    %v150 = vsel %vm121, %v42, 0
    %v153 = vsel %vm121, %v43, 0
    %v156 = vsel %vm121, %v44, 0
    %v159 = vsel %vm121, %v45, 0
    %v162 = vsel %vm121, %v46, 0
    %v165 = vsel %vm121, %v47, 0
    %v168 = vsel %vm121, %v48, 0
    %v171 = vsel %vm121, %v49, 0
    %v174 = vsel %vm121, %v50, 0
    %v177 = vsel %vm121, %v51, 0
    %v180 = vsel %vm121, %v52, 0
    %v183 = vsel %vm121, %v53, 0
    %v186 = vsel %vm121, %v54, 0
    %v189 = vsel %vm121, %v55, 0
    %v192 = vsel %vm121, %v56, 0
    %v195 = vsel %vm121, %v57, 0
    %v198 = vsel %vm121, %v58, 0
    %v201 = vsel %vm121, %v59, 0
    %v204 = vsel %vm121, %v60, 0
    %v207 = vsel %vm121, %v61, 0
    %v210 = vsel %vm121, %v62, 0
    %v213 = vsel %vm121, %v63, 0
    %v216 = vsel %vm121, %v64, 0
    %v219 = vsel %vm121, %v65, 0
    %v222 = vsel %vm121, %v66, 0
    %v225 = vsel %vm121, %v67, 0
    %v228 = vsel %vm121, %v68, 0
    %v231 = vsel %vm121, %v69, 0
    %v234 = vsel %vm121, %v70, 0
    %v237 = vsel %vm121, %v71, 0
    %v240 = vsel %vm121, %v72, 0
    %v243 = vsel %vm121, %v73, 0
    %v246 = vsel %vm121, %v74, 0
    %v249 = vsel %vm121, %v75, 0
    %v252 = vsel %vm121, %v76, 0
    %v255 = vsel %vm121, %v77, 0
    %v258 = vsel %vm121, %v78, 0
    %v261 = vsel %vm121, %v79, 0
    %v264 = vsel %vm121, %v80, 0
    %v267 = vsel %vm121, %v81, 0
    %v270 = vsel %vm121, %v82, 0
    %v273 = vsel %vm121, %v83, 0
    %v276 = vsel %vm121, %v84, 0
    %v279 = vsel %vm121, %v85, 0
    %v282 = vsel %vm121, %v86, 0
    %v285 = vsel %vm121, %v87, 0
    %v288 = vsel %vm121, %v88, 0
    %v291 = vsel %vm121, %v89, 0
    %v294 = vsel %vm121, %v90, 0
    %v297 = vsel %vm121, %v91, 0
    %v300 = vsel %vm121, %v92, 0
    %v303 = vsel %vm121, %v93, 0
    %v306 = vsel %vm121, %v94, 0
    %v309 = vsel %vm121, %v95, 0
    %v312 = vsel %vm121, %v96, 0
    %v315 = vsel %vm121, %v97, 0
    %v318 = vsel %vm121, %v98, 0
    %v321 = vsel %vm121, %v99, 0
    %v324 = vsel %vm121, %v100, 0
    %v327 = vsel %vm121, %v101, 0
    %v330 = vsel %vm121, %v102, 0
    %v333 = vsel %vm121, %v103, 0
    %v336 = vsel %vm121, %v104, 0
    %v339 = vsel %vm121, %v105, 0
    %v342 = vsel %vm121, %v106, 0
    %v345 = vsel %vm121, %v107, 0
    %v348 = vsel %vm121, %v108, 0
    %v351 = vsel %vm121, %v109, 0
    %v354 = vsel %vm121, %v110, 0
    %v357 = vsel %vm121, %v111, 0
    %v360 = vsel %vm121, %v112, 0
    %362 = vmatprep.subr.mxu0 0.0
    %363 = vmatpush1.msra.mxu0 %v113
    %364 = vmatprep.subr.mxu0 0.0
    %365 = vmatpush1.msra.mxu0 %v114
    %366 = vmatprep.subr.mxu0 0.0
    %367 = vmatpush1.msra.mxu0 %v115
    %368 = vmatprep.subr.mxu0 0.0
    %369 = vmatpush1.msra.mxu0 %v116
    %370 = vmatprep.subr.mxu0 0.0
    %371 = vmatpush1.msra.mxu0 %v117
    %372 = vmatprep.subr.mxu0 0.0
    %373 = vmatpush1.msra.mxu0 %v118
    %374 = vmatprep.subr.mxu0 0.0
    %375 = vmatpush1.msra.mxu0 %v119
    %376 = vmatprep.subr.mxu0 0.0
    %377 = vmatpush1.msra.mxu0 %v120
    %378 = vmatprep.subr.mxu0 0.0
    %379 = vmatpush1.msra.mxu0 0.0
    %380 = vmatprep.subr.mxu0 0.0
    %381 = vmatpush1.msra.mxu0 0.0
    %382 = vmatprep.subr.mxu0 0.0
    %383 = vmatpush1.msra.mxu0 0.0
    %384 = vmatprep.subr.mxu0 0.0
    %385 = vmatpush1.msra.mxu0 0.0
    %386 = vmatprep.subr.mxu0 0.0
    %387 = vmatpush1.msra.mxu0 0.0
    %388 = vmatprep.subr.mxu0 0.0
    %389 = vmatpush1.msra.mxu0 0.0
    %390 = vmatprep.subr.mxu0 0.0
    %391 = vmatpush1.msra.mxu0 0.0
    %392 = vmatprep.subr.mxu0 0.0
    %393 = vmatpush1.msra.mxu0 0.0
    %394 = vmatprep.subr.mxu0 0.0
    %395 = vmatpush1.msra.mxu0 0.0
    %396 = vmatprep.subr.mxu0 0.0
    %397 = vmatpush1.msra.mxu0 0.0
    %398 = vmatprep.subr.mxu0 0.0
    %399 = vmatpush1.msra.mxu0 0.0
    %400 = vmatprep.subr.mxu0 0.0
    %401 = vmatpush1.msra.mxu0 0.0
    %402 = vmatprep.subr.mxu0 0.0
    %403 = vmatpush1.msra.mxu0 0.0
    %404 = vmatprep.subr.mxu0 0.0
    %405 = vmatpush1.msra.mxu0 0.0
    %406 = vmatprep.subr.mxu0 0.0
    %407 = vmatpush1.msra.mxu0 0.0
    %408 = vmatprep.subr.mxu0 0.0
    %409 = vmatpush1.msra.mxu0 0.0
    %410 = vmatprep.subr.mxu0 0.0
    %411 = vmatpush1.msra.mxu0 0.0
    %412 = vmatprep.subr.mxu0 0.0
    %413 = vmatpush1.msra.mxu0 0.0
    %414 = vmatprep.subr.mxu0 0.0
    %415 = vmatpush1.msra.mxu0 0.0
    %416 = vmatprep.subr.mxu0 0.0
    %417 = vmatpush1.msra.mxu0 0.0
    %418 = vmatprep.subr.mxu0 0.0
    %419 = vmatpush1.msra.mxu0 0.0
    %420 = vmatprep.subr.mxu0 0.0
    %421 = vmatpush1.msra.mxu0 0.0
    %422 = vmatprep.subr.mxu0 0.0
    %423 = vmatpush1.msra.mxu0 0.0
    %424 = vmatprep.subr.mxu0 0.0
    %425 = vmatpush1.msra.mxu0 0.0
    %426 = vmatprep.mubr.f32.mxu0 0.0
    %427 = vmatmul.mubr.f32.gmra.mrb[0].mxu0 %v123
    %v428 = vpop.f32.mrb[0].mxu0
    %v429 = vadd.f32 0.0, %v428
    %v430 = vpop.f32.mrb[0].mxu0
    %431 = vmatprep.mubr.f32.mxu0 0.0
    %432 = vmatmul.mubr.f32.gmra.mrb[0].mxu0 %v126
    %v433 = vpop.f32.mrb[0].mxu0
    %v434 = vadd.f32 0.0, %v433
    %v435 = vpop.f32.mrb[0].mxu0
    %436 = vmatprep.mubr.f32.mxu0 0.0
    %437 = vmatmul.mubr.f32.gmra.mrb[0].mxu0 %v129
    %v438 = vpop.f32.mrb[0].mxu0
    %v439 = vadd.f32 0.0, %v438
    %v440 = vpop.f32.mrb[0].mxu0
    %441 = vmatprep.mubr.f32.mxu0 0.0
    %442 = vmatmul.mubr.f32.gmra.mrb[0].mxu0 %v132
    %v443 = vpop.f32.mrb[0].mxu0
    %v444 = vadd.f32 0.0, %v443
    %v445 = vpop.f32.mrb[0].mxu0
    %446 = vmatprep.mubr.f32.mxu0 0.0
    %447 = vmatmul.mubr.f32.gmra.mrb[0].mxu0 %v135
    %v448 = vpop.f32.mrb[0].mxu0
    %v449 = vadd.f32 0.0, %v448
    %v450 = vpop.f32.mrb[0].mxu0
    %451 = vmatprep.mubr.f32.mxu0 0.0
    %452 = vmatmul.mubr.f32.gmra.mrb[0].mxu0 %v138
    %v453 = vpop.f32.mrb[0].mxu0
    %v454 = vadd.f32 0.0, %v453
    %v455 = vpop.f32.mrb[0].mxu0
    %456 = vmatprep.mubr.f32.mxu0 0.0
    %457 = vmatmul.mubr.f32.gmra.mrb[0].mxu0 %v141
    %v458 = vpop.f32.mrb[0].mxu0
    %v459 = vadd.f32 0.0, %v458
    %v460 = vpop.f32.mrb[0].mxu0
    %461 = vmatprep.mubr.f32.mxu0 0.0
    %462 = vmatmul.mubr.f32.gmra.mrb[0].mxu0 %v144
    %v463 = vpop.f32.mrb[0].mxu0
    %v464 = vadd.f32 0.0, %v463
    %v465 = vpop.f32.mrb[0].mxu0
    %466 = vmatprep.mubr.f32.mxu0 0.0
    %467 = vmatmul.mubr.f32.gmra.mrb[0].mxu0 %v147
    %v468 = vpop.f32.mrb[0].mxu0
    %v469 = vadd.f32 0.0, %v468
    %v470 = vpop.f32.mrb[0].mxu0
    %471 = vmatprep.mubr.f32.mxu0 0.0
    %472 = vmatmul.mubr.f32.gmra.mrb[0].mxu0 %v150
    %v473 = vpop.f32.mrb[0].mxu0
    %v474 = vadd.f32 0.0, %v473
    %v475 = vpop.f32.mrb[0].mxu0
    %476 = vmatprep.mubr.f32.mxu0 0.0
    %477 = vmatmul.mubr.f32.gmra.mrb[0].mxu0 %v153
    %v478 = vpop.f32.mrb[0].mxu0
    %v479 = vadd.f32 0.0, %v478
    %v480 = vpop.f32.mrb[0].mxu0
    %481 = vmatprep.mubr.f32.mxu0 0.0
    %482 = vmatmul.mubr.f32.gmra.mrb[0].mxu0 %v156
    %v483 = vpop.f32.mrb[0].mxu0
    %v484 = vadd.f32 0.0, %v483
    %v485 = vpop.f32.mrb[0].mxu0
    %486 = vmatprep.mubr.f32.mxu0 0.0
    %487 = vmatmul.mubr.f32.gmra.mrb[0].mxu0 %v159
    %v488 = vpop.f32.mrb[0].mxu0
    %v489 = vadd.f32 0.0, %v488
    %v490 = vpop.f32.mrb[0].mxu0
    %491 = vmatprep.mubr.f32.mxu0 0.0
    %492 = vmatmul.mubr.f32.gmra.mrb[0].mxu0 %v162
    %v493 = vpop.f32.mrb[0].mxu0
    %v494 = vadd.f32 0.0, %v493
    %v495 = vpop.f32.mrb[0].mxu0
    %496 = vmatprep.mubr.f32.mxu0 0.0
    %497 = vmatmul.mubr.f32.gmra.mrb[0].mxu0 %v165
    %v498 = vpop.f32.mrb[0].mxu0
    %v499 = vadd.f32 0.0, %v498
    %v500 = vpop.f32.mrb[0].mxu0
    %501 = vmatprep.mubr.f32.mxu0 0.0
    %502 = vmatmul.mubr.f32.gmra.mrb[0].mxu0 %v168
    %v503 = vpop.f32.mrb[0].mxu0
    %v504 = vadd.f32 0.0, %v503
    %v505 = vpop.f32.mrb[0].mxu0
    %506 = vmatprep.mubr.f32.mxu0 0.0
    %507 = vmatmul.mubr.f32.gmra.mrb[0].mxu0 %v171
    %v508 = vpop.f32.mrb[0].mxu0
    %v509 = vadd.f32 0.0, %v508
    %v510 = vpop.f32.mrb[0].mxu0
    %511 = vmatprep.mubr.f32.mxu0 0.0
    %512 = vmatmul.mubr.f32.gmra.mrb[0].mxu0 %v174
    %v513 = vpop.f32.mrb[0].mxu0
    %v514 = vadd.f32 0.0, %v513
    %v515 = vpop.f32.mrb[0].mxu0
    %516 = vmatprep.mubr.f32.mxu0 0.0
    %517 = vmatmul.mubr.f32.gmra.mrb[0].mxu0 %v177
    %v518 = vpop.f32.mrb[0].mxu0
    %v519 = vadd.f32 0.0, %v518
    %v520 = vpop.f32.mrb[0].mxu0
    %521 = vmatprep.mubr.f32.mxu0 0.0
    %522 = vmatmul.mubr.f32.gmra.mrb[0].mxu0 %v180
    %v523 = vpop.f32.mrb[0].mxu0
    %v524 = vadd.f32 0.0, %v523
    %v525 = vpop.f32.mrb[0].mxu0
    %526 = vmatprep.mubr.f32.mxu0 0.0
    %527 = vmatmul.mubr.f32.gmra.mrb[0].mxu0 %v183
    %v528 = vpop.f32.mrb[0].mxu0
    %v529 = vadd.f32 0.0, %v528
    %v530 = vpop.f32.mrb[0].mxu0
    %531 = vmatprep.mubr.f32.mxu0 0.0
    %532 = vmatmul.mubr.f32.gmra.mrb[0].mxu0 %v186
    %v533 = vpop.f32.mrb[0].mxu0
    %v534 = vadd.f32 0.0, %v533
    %v535 = vpop.f32.mrb[0].mxu0
    %536 = vmatprep.mubr.f32.mxu0 0.0
    %537 = vmatmul.mubr.f32.gmra.mrb[0].mxu0 %v189
    %v538 = vpop.f32.mrb[0].mxu0
    %v539 = vadd.f32 0.0, %v538
    %v540 = vpop.f32.mrb[0].mxu0
    %541 = vmatprep.mubr.f32.mxu0 0.0
    %542 = vmatmul.mubr.f32.gmra.mrb[0].mxu0 %v192
    %v543 = vpop.f32.mrb[0].mxu0
    %v544 = vadd.f32 0.0, %v543
    %v545 = vpop.f32.mrb[0].mxu0
    %546 = vmatprep.mubr.f32.mxu0 0.0
    %547 = vmatmul.mubr.f32.gmra.mrb[0].mxu0 %v195
    %v548 = vpop.f32.mrb[0].mxu0
    %v549 = vadd.f32 0.0, %v548
    %v550 = vpop.f32.mrb[0].mxu0
    %551 = vmatprep.mubr.f32.mxu0 0.0
    %552 = vmatmul.mubr.f32.gmra.mrb[0].mxu0 %v198
    %v553 = vpop.f32.mrb[0].mxu0
    %v554 = vadd.f32 0.0, %v553
    %v555 = vpop.f32.mrb[0].mxu0
    %556 = vmatprep.mubr.f32.mxu0 0.0
    %557 = vmatmul.mubr.f32.gmra.mrb[0].mxu0 %v201
    %v558 = vpop.f32.mrb[0].mxu0
    %v559 = vadd.f32 0.0, %v558
    %v560 = vpop.f32.mrb[0].mxu0
    %561 = vmatprep.mubr.f32.mxu0 0.0
    %562 = vmatmul.mubr.f32.gmra.mrb[0].mxu0 %v204
    %v563 = vpop.f32.mrb[0].mxu0
    %v564 = vadd.f32 0.0, %v563
    %v565 = vpop.f32.mrb[0].mxu0
    %566 = vmatprep.mubr.f32.mxu0 0.0
    %567 = vmatmul.mubr.f32.gmra.mrb[0].mxu0 %v207
    %v568 = vpop.f32.mrb[0].mxu0
    %v569 = vadd.f32 0.0, %v568
    %v570 = vpop.f32.mrb[0].mxu0
    %571 = vmatprep.mubr.f32.mxu0 0.0
    %572 = vmatmul.mubr.f32.gmra.mrb[0].mxu0 %v210
    %v573 = vpop.f32.mrb[0].mxu0
    %v574 = vadd.f32 0.0, %v573
    %v575 = vpop.f32.mrb[0].mxu0
    %576 = vmatprep.mubr.f32.mxu0 0.0
    %577 = vmatmul.mubr.f32.gmra.mrb[0].mxu0 %v213
    %v578 = vpop.f32.mrb[0].mxu0
    %v579 = vadd.f32 0.0, %v578
    %v580 = vpop.f32.mrb[0].mxu0
    %581 = vmatprep.mubr.f32.mxu0 0.0
    %582 = vmatmul.mubr.f32.gmra.mrb[0].mxu0 %v216
    %v583 = vpop.f32.mrb[0].mxu0
    %v584 = vadd.f32 0.0, %v583
    %v585 = vpop.f32.mrb[0].mxu0
    %586 = vmatprep.mubr.f32.mxu0 0.0
    %587 = vmatmul.mubr.f32.gmra.mrb[0].mxu0 %v219
    %v588 = vpop.f32.mrb[0].mxu0
    %v589 = vadd.f32 0.0, %v588
    %v590 = vpop.f32.mrb[0].mxu0
    %591 = vmatprep.mubr.f32.mxu0 0.0
    %592 = vmatmul.mubr.f32.gmra.mrb[0].mxu0 %v222
    %v593 = vpop.f32.mrb[0].mxu0
    %v594 = vadd.f32 0.0, %v593
    %v595 = vpop.f32.mrb[0].mxu0
    %596 = vmatprep.mubr.f32.mxu0 0.0
    %597 = vmatmul.mubr.f32.gmra.mrb[0].mxu0 %v225
    %v598 = vpop.f32.mrb[0].mxu0
    %v599 = vadd.f32 0.0, %v598
    %v600 = vpop.f32.mrb[0].mxu0
    %601 = vmatprep.mubr.f32.mxu0 0.0
    %602 = vmatmul.mubr.f32.gmra.mrb[0].mxu0 %v228
    %v603 = vpop.f32.mrb[0].mxu0
    %v604 = vadd.f32 0.0, %v603
    %v605 = vpop.f32.mrb[0].mxu0
    %606 = vmatprep.mubr.f32.mxu0 0.0
    %607 = vmatmul.mubr.f32.gmra.mrb[0].mxu0 %v231
    %v608 = vpop.f32.mrb[0].mxu0
    %v609 = vadd.f32 0.0, %v608
    %v610 = vpop.f32.mrb[0].mxu0
    %611 = vmatprep.mubr.f32.mxu0 0.0
    %612 = vmatmul.mubr.f32.gmra.mrb[0].mxu0 %v234
    %v613 = vpop.f32.mrb[0].mxu0
    %v614 = vadd.f32 0.0, %v613
    %v615 = vpop.f32.mrb[0].mxu0
    %616 = vmatprep.mubr.f32.mxu0 0.0
    %617 = vmatmul.mubr.f32.gmra.mrb[0].mxu0 %v237
    %v618 = vpop.f32.mrb[0].mxu0
    %v619 = vadd.f32 0.0, %v618
    %v620 = vpop.f32.mrb[0].mxu0
    %621 = vmatprep.mubr.f32.mxu0 0.0
    %622 = vmatmul.mubr.f32.gmra.mrb[0].mxu0 %v240
    %v623 = vpop.f32.mrb[0].mxu0
    %v624 = vadd.f32 0.0, %v623
    %v625 = vpop.f32.mrb[0].mxu0
    %626 = vmatprep.mubr.f32.mxu0 0.0
    %627 = vmatmul.mubr.f32.gmra.mrb[0].mxu0 %v243
    %v628 = vpop.f32.mrb[0].mxu0
    %v629 = vadd.f32 0.0, %v628
    %v630 = vpop.f32.mrb[0].mxu0
    %631 = vmatprep.mubr.f32.mxu0 0.0
    %632 = vmatmul.mubr.f32.gmra.mrb[0].mxu0 %v246
    %v633 = vpop.f32.mrb[0].mxu0
    %v634 = vadd.f32 0.0, %v633
    %v635 = vpop.f32.mrb[0].mxu0
    %636 = vmatprep.mubr.f32.mxu0 0.0
    %637 = vmatmul.mubr.f32.gmra.mrb[0].mxu0 %v249
    %v638 = vpop.f32.mrb[0].mxu0
    %v639 = vadd.f32 0.0, %v638
    %v640 = vpop.f32.mrb[0].mxu0
    %641 = vmatprep.mubr.f32.mxu0 0.0
    %642 = vmatmul.mubr.f32.gmra.mrb[0].mxu0 %v252
    %v643 = vpop.f32.mrb[0].mxu0
    %v644 = vadd.f32 0.0, %v643
    %v645 = vpop.f32.mrb[0].mxu0
    %646 = vmatprep.mubr.f32.mxu0 0.0
    %647 = vmatmul.mubr.f32.gmra.mrb[0].mxu0 %v255
    %v648 = vpop.f32.mrb[0].mxu0
    %v649 = vadd.f32 0.0, %v648
    %v650 = vpop.f32.mrb[0].mxu0
    %651 = vmatprep.mubr.f32.mxu0 0.0
    %652 = vmatmul.mubr.f32.gmra.mrb[0].mxu0 %v258
    %v653 = vpop.f32.mrb[0].mxu0
    %v654 = vadd.f32 0.0, %v653
    %v655 = vpop.f32.mrb[0].mxu0
    %656 = vmatprep.mubr.f32.mxu0 0.0
    %657 = vmatmul.mubr.f32.gmra.mrb[0].mxu0 %v261
    %v658 = vpop.f32.mrb[0].mxu0
    %v659 = vadd.f32 0.0, %v658
    %v660 = vpop.f32.mrb[0].mxu0
    %661 = vmatprep.mubr.f32.mxu0 0.0
    %662 = vmatmul.mubr.f32.gmra.mrb[0].mxu0 %v264
    %v663 = vpop.f32.mrb[0].mxu0
    %v664 = vadd.f32 0.0, %v663
    %v665 = vpop.f32.mrb[0].mxu0
    %666 = vmatprep.mubr.f32.mxu0 0.0
    %667 = vmatmul.mubr.f32.gmra.mrb[0].mxu0 %v267
    %v668 = vpop.f32.mrb[0].mxu0
    %v669 = vadd.f32 0.0, %v668
    %v670 = vpop.f32.mrb[0].mxu0
    %671 = vmatprep.mubr.f32.mxu0 0.0
    %672 = vmatmul.mubr.f32.gmra.mrb[0].mxu0 %v270
    %v673 = vpop.f32.mrb[0].mxu0
    %v674 = vadd.f32 0.0, %v673
    %v675 = vpop.f32.mrb[0].mxu0
    %676 = vmatprep.mubr.f32.mxu0 0.0
    %677 = vmatmul.mubr.f32.gmra.mrb[0].mxu0 %v273
    %v678 = vpop.f32.mrb[0].mxu0
    %v679 = vadd.f32 0.0, %v678
    %v680 = vpop.f32.mrb[0].mxu0
    %681 = vmatprep.mubr.f32.mxu0 0.0
    %682 = vmatmul.mubr.f32.gmra.mrb[0].mxu0 %v276
    %v683 = vpop.f32.mrb[0].mxu0
    %v684 = vadd.f32 0.0, %v683
    %v685 = vpop.f32.mrb[0].mxu0
    %686 = vmatprep.mubr.f32.mxu0 0.0
    %687 = vmatmul.mubr.f32.gmra.mrb[0].mxu0 %v279
    %v688 = vpop.f32.mrb[0].mxu0
    %v689 = vadd.f32 0.0, %v688
    %v690 = vpop.f32.mrb[0].mxu0
    %691 = vmatprep.mubr.f32.mxu0 0.0
    %692 = vmatmul.mubr.f32.gmra.mrb[0].mxu0 %v282
    %v693 = vpop.f32.mrb[0].mxu0
    %v694 = vadd.f32 0.0, %v693
    %v695 = vpop.f32.mrb[0].mxu0
    %696 = vmatprep.mubr.f32.mxu0 0.0
    %697 = vmatmul.mubr.f32.gmra.mrb[0].mxu0 %v285
    %v698 = vpop.f32.mrb[0].mxu0
    %v699 = vadd.f32 0.0, %v698
    %v700 = vpop.f32.mrb[0].mxu0
    %701 = vmatprep.mubr.f32.mxu0 0.0
    %702 = vmatmul.mubr.f32.gmra.mrb[0].mxu0 %v288
    %v703 = vpop.f32.mrb[0].mxu0
    %v704 = vadd.f32 0.0, %v703
    %v705 = vpop.f32.mrb[0].mxu0
    %706 = vmatprep.mubr.f32.mxu0 0.0
    %707 = vmatmul.mubr.f32.gmra.mrb[0].mxu0 %v291
    %v708 = vpop.f32.mrb[0].mxu0
    %v709 = vadd.f32 0.0, %v708
    %v710 = vpop.f32.mrb[0].mxu0
    %711 = vmatprep.mubr.f32.mxu0 0.0
    %712 = vmatmul.mubr.f32.gmra.mrb[0].mxu0 %v294
    %v713 = vpop.f32.mrb[0].mxu0
    %v714 = vadd.f32 0.0, %v713
    %v715 = vpop.f32.mrb[0].mxu0
    %716 = vmatprep.mubr.f32.mxu0 0.0
    %717 = vmatmul.mubr.f32.gmra.mrb[0].mxu0 %v297
    %v718 = vpop.f32.mrb[0].mxu0
    %v719 = vadd.f32 0.0, %v718
    %v720 = vpop.f32.mrb[0].mxu0
    %721 = vmatprep.mubr.f32.mxu0 0.0
    %722 = vmatmul.mubr.f32.gmra.mrb[0].mxu0 %v300
    %v723 = vpop.f32.mrb[0].mxu0
    %v724 = vadd.f32 0.0, %v723
    %v725 = vpop.f32.mrb[0].mxu0
    %726 = vmatprep.mubr.f32.mxu0 0.0
    %727 = vmatmul.mubr.f32.gmra.mrb[0].mxu0 %v303
    %v728 = vpop.f32.mrb[0].mxu0
    %v729 = vadd.f32 0.0, %v728
    %v730 = vpop.f32.mrb[0].mxu0
    %731 = vmatprep.mubr.f32.mxu0 0.0
    %732 = vmatmul.mubr.f32.gmra.mrb[0].mxu0 %v306
    %v733 = vpop.f32.mrb[0].mxu0
    %v734 = vadd.f32 0.0, %v733
    %v735 = vpop.f32.mrb[0].mxu0
    %736 = vmatprep.mubr.f32.mxu0 0.0
    %737 = vmatmul.mubr.f32.gmra.mrb[0].mxu0 %v309
    %v738 = vpop.f32.mrb[0].mxu0
    %v739 = vadd.f32 0.0, %v738
    %v740 = vpop.f32.mrb[0].mxu0
    %741 = vmatprep.mubr.f32.mxu0 0.0
    %742 = vmatmul.mubr.f32.gmra.mrb[0].mxu0 %v312
    %v743 = vpop.f32.mrb[0].mxu0
    %v744 = vadd.f32 0.0, %v743
    %v745 = vpop.f32.mrb[0].mxu0
    %746 = vmatprep.mubr.f32.mxu0 0.0
    %747 = vmatmul.mubr.f32.gmra.mrb[0].mxu0 %v315
    %v748 = vpop.f32.mrb[0].mxu0
    %v749 = vadd.f32 0.0, %v748
    %v750 = vpop.f32.mrb[0].mxu0
    %751 = vmatprep.mubr.f32.mxu0 0.0
    %752 = vmatmul.mubr.f32.gmra.mrb[0].mxu0 %v318
    %v753 = vpop.f32.mrb[0].mxu0
    %v754 = vadd.f32 0.0, %v753
    %v755 = vpop.f32.mrb[0].mxu0
    %756 = vmatprep.mubr.f32.mxu0 0.0
    %757 = vmatmul.mubr.f32.gmra.mrb[0].mxu0 %v321
    %v758 = vpop.f32.mrb[0].mxu0
    %v759 = vadd.f32 0.0, %v758
    %v760 = vpop.f32.mrb[0].mxu0
    %761 = vmatprep.mubr.f32.mxu0 0.0
    %762 = vmatmul.mubr.f32.gmra.mrb[0].mxu0 %v324
    %v763 = vpop.f32.mrb[0].mxu0
    %v764 = vadd.f32 0.0, %v763
    %v765 = vpop.f32.mrb[0].mxu0
    %766 = vmatprep.mubr.f32.mxu0 0.0
    %767 = vmatmul.mubr.f32.gmra.mrb[0].mxu0 %v327
    %v768 = vpop.f32.mrb[0].mxu0
    %v769 = vadd.f32 0.0, %v768
    %v770 = vpop.f32.mrb[0].mxu0
    %771 = vmatprep.mubr.f32.mxu0 0.0
    %772 = vmatmul.mubr.f32.gmra.mrb[0].mxu0 %v330
    %v773 = vpop.f32.mrb[0].mxu0
    %v774 = vadd.f32 0.0, %v773
    %v775 = vpop.f32.mrb[0].mxu0
    %776 = vmatprep.mubr.f32.mxu0 0.0
    %777 = vmatmul.mubr.f32.gmra.mrb[0].mxu0 %v333
    %v778 = vpop.f32.mrb[0].mxu0
    %v779 = vadd.f32 0.0, %v778
    %v780 = vpop.f32.mrb[0].mxu0
    %781 = vmatprep.mubr.f32.mxu0 0.0
    %782 = vmatmul.mubr.f32.gmra.mrb[0].mxu0 %v336
    %v783 = vpop.f32.mrb[0].mxu0
    %v784 = vadd.f32 0.0, %v783
    %v785 = vpop.f32.mrb[0].mxu0
    %786 = vmatprep.mubr.f32.mxu0 0.0
    %787 = vmatmul.mubr.f32.gmra.mrb[0].mxu0 %v339
    %v788 = vpop.f32.mrb[0].mxu0
    %v789 = vadd.f32 0.0, %v788
    %v790 = vpop.f32.mrb[0].mxu0
    %791 = vmatprep.mubr.f32.mxu0 0.0
    %792 = vmatmul.mubr.f32.gmra.mrb[0].mxu0 %v342
    %v793 = vpop.f32.mrb[0].mxu0
    %v794 = vadd.f32 0.0, %v793
    %v795 = vpop.f32.mrb[0].mxu0
    %796 = vmatprep.mubr.f32.mxu0 0.0
    %797 = vmatmul.mubr.f32.gmra.mrb[0].mxu0 %v345
    %v798 = vpop.f32.mrb[0].mxu0
    %v799 = vadd.f32 0.0, %v798
    %v800 = vpop.f32.mrb[0].mxu0
    %801 = vmatprep.mubr.f32.mxu0 0.0
    %802 = vmatmul.mubr.f32.gmra.mrb[0].mxu0 %v348
    %v803 = vpop.f32.mrb[0].mxu0
    %v804 = vadd.f32 0.0, %v803
    %v805 = vpop.f32.mrb[0].mxu0
    %806 = vmatprep.mubr.f32.mxu0 0.0
    %807 = vmatmul.mubr.f32.gmra.mrb[0].mxu0 %v351
    %v808 = vpop.f32.mrb[0].mxu0
    %v809 = vadd.f32 0.0, %v808
    %v810 = vpop.f32.mrb[0].mxu0
    %811 = vmatprep.mubr.f32.mxu0 0.0
    %812 = vmatmul.mubr.f32.gmra.mrb[0].mxu0 %v354
    %v813 = vpop.f32.mrb[0].mxu0
    %v814 = vadd.f32 0.0, %v813
    %v815 = vpop.f32.mrb[0].mxu0
    %816 = vmatprep.mubr.f32.mxu0 0.0
    %817 = vmatmul.mubr.f32.gmra.mrb[0].mxu0 %v357
    %v818 = vpop.f32.mrb[0].mxu0
    %v819 = vadd.f32 0.0, %v818
    %v820 = vpop.f32.mrb[0].mxu0
    %821 = vmatprep.mubr.f32.mxu0 0.0
    %822 = vmatmul.mubr.f32.gmra.mrb[0].mxu0 %v360
    %v823 = vpop.f32.mrb[0].mxu0
    %v824 = vadd.f32 0.0, %v823
    %v825 = vpop.f32.mrb[0].mxu0
    %826 = vdwg.mxu0
    %vm827 = vcmask 195584
    %828 = vst.msk [vmem:[#allocation2] sm:$0xff] %vm827, %v429
    %829 = vst.msk [vmem:[#allocation2 + $0x8] sm:$0xff] %vm827, %v434
    %830 = vst.msk [vmem:[#allocation2 + $0x10] sm:$0xff] %vm827, %v439
    %831 = vst.msk [vmem:[#allocation2 + $0x18] sm:$0xff] %vm827, %v444
    %832 = vst.msk [vmem:[#allocation2 + $0x20] sm:$0xff] %vm827, %v449
    %833 = vst.msk [vmem:[#allocation2 + $0x28] sm:$0xff] %vm827, %v454
    %834 = vst.msk [vmem:[#allocation2 + $0x30] sm:$0xff] %vm827, %v459
    %835 = vst.msk [vmem:[#allocation2 + $0x38] sm:$0xff] %vm827, %v464
    %836 = vst.msk [vmem:[#allocation2 + $0x40] sm:$0xff] %vm827, %v469
    %837 = vst.msk [vmem:[#allocation2 + $0x48] sm:$0xff] %vm827, %v474
    %838 = vst.msk [vmem:[#allocation2 + $0x50] sm:$0xff] %vm827, %v479
    %839 = vst.msk [vmem:[#allocation2 + $0x58] sm:$0xff] %vm827, %v484
    %840 = vst.msk [vmem:[#allocation2 + $0x60] sm:$0xff] %vm827, %v489
    %841 = vst.msk [vmem:[#allocation2 + $0x68] sm:$0xff] %vm827, %v494
    %842 = vst.msk [vmem:[#allocation2 + $0x70] sm:$0xff] %vm827, %v499
    %843 = vst.msk [vmem:[#allocation2 + $0x78] sm:$0xff] %vm827, %v504
    %844 = vst.msk [vmem:[#allocation2 + $0x80] sm:$0xff] %vm827, %v509
    %845 = vst.msk [vmem:[#allocation2 + $0x88] sm:$0xff] %vm827, %v514
    %846 = vst.msk [vmem:[#allocation2 + $0x90] sm:$0xff] %vm827, %v519
    %847 = vst.msk [vmem:[#allocation2 + $0x98] sm:$0xff] %vm827, %v524
    %848 = vst.msk [vmem:[#allocation2 + $0xa0] sm:$0xff] %vm827, %v529
    %849 = vst.msk [vmem:[#allocation2 + $0xa8] sm:$0xff] %vm827, %v534
    %850 = vst.msk [vmem:[#allocation2 + $0xb0] sm:$0xff] %vm827, %v539
    %851 = vst.msk [vmem:[#allocation2 + $0xb8] sm:$0xff] %vm827, %v544
    %852 = vst.msk [vmem:[#allocation2 + $0xc0] sm:$0xff] %vm827, %v549
    %853 = vst.msk [vmem:[#allocation2 + $0xc8] sm:$0xff] %vm827, %v554
    %854 = vst.msk [vmem:[#allocation2 + $0xd0] sm:$0xff] %vm827, %v559
    %855 = vst.msk [vmem:[#allocation2 + $0xd8] sm:$0xff] %vm827, %v564
    %856 = vst.msk [vmem:[#allocation2 + $0xe0] sm:$0xff] %vm827, %v569
    %857 = vst.msk [vmem:[#allocation2 + $0xe8] sm:$0xff] %vm827, %v574
    %858 = vst.msk [vmem:[#allocation2 + $0xf0] sm:$0xff] %vm827, %v579
    %859 = vst.msk [vmem:[#allocation2 + $0xf8] sm:$0xff] %vm827, %v584
    %860 = vst.msk [vmem:[#allocation2 + $0x100] sm:$0xff] %vm827, %v589
    %861 = vst.msk [vmem:[#allocation2 + $0x108] sm:$0xff] %vm827, %v594
    %862 = vst.msk [vmem:[#allocation2 + $0x110] sm:$0xff] %vm827, %v599
    %863 = vst.msk [vmem:[#allocation2 + $0x118] sm:$0xff] %vm827, %v604
    %864 = vst.msk [vmem:[#allocation2 + $0x120] sm:$0xff] %vm827, %v609
    %865 = vst.msk [vmem:[#allocation2 + $0x128] sm:$0xff] %vm827, %v614
    %866 = vst.msk [vmem:[#allocation2 + $0x130] sm:$0xff] %vm827, %v619
    %867 = vst.msk [vmem:[#allocation2 + $0x138] sm:$0xff] %vm827, %v624
    %868 = vst.msk [vmem:[#allocation2 + $0x140] sm:$0xff] %vm827, %v629
    %869 = vst.msk [vmem:[#allocation2 + $0x148] sm:$0xff] %vm827, %v634
    %870 = vst.msk [vmem:[#allocation2 + $0x150] sm:$0xff] %vm827, %v639
    %871 = vst.msk [vmem:[#allocation2 + $0x158] sm:$0xff] %vm827, %v644
    %872 = vst.msk [vmem:[#allocation2 + $0x160] sm:$0xff] %vm827, %v649
    %873 = vst.msk [vmem:[#allocation2 + $0x168] sm:$0xff] %vm827, %v654
    %874 = vst.msk [vmem:[#allocation2 + $0x170] sm:$0xff] %vm827, %v659
    %875 = vst.msk [vmem:[#allocation2 + $0x178] sm:$0xff] %vm827, %v664
    %876 = vst.msk [vmem:[#allocation2 + $0x180] sm:$0xff] %vm827, %v669
    %877 = vst.msk [vmem:[#allocation2 + $0x188] sm:$0xff] %vm827, %v674
    %878 = vst.msk [vmem:[#allocation2 + $0x190] sm:$0xff] %vm827, %v679
    %879 = vst.msk [vmem:[#allocation2 + $0x198] sm:$0xff] %vm827, %v684
    %880 = vst.msk [vmem:[#allocation2 + $0x1a0] sm:$0xff] %vm827, %v689
    %881 = vst.msk [vmem:[#allocation2 + $0x1a8] sm:$0xff] %vm827, %v694
    %882 = vst.msk [vmem:[#allocation2 + $0x1b0] sm:$0xff] %vm827, %v699
    %883 = vst.msk [vmem:[#allocation2 + $0x1b8] sm:$0xff] %vm827, %v704
    %884 = vst.msk [vmem:[#allocation2 + $0x1c0] sm:$0xff] %vm827, %v709
    %885 = vst.msk [vmem:[#allocation2 + $0x1c8] sm:$0xff] %vm827, %v714
    %886 = vst.msk [vmem:[#allocation2 + $0x1d0] sm:$0xff] %vm827, %v719
    %887 = vst.msk [vmem:[#allocation2 + $0x1d8] sm:$0xff] %vm827, %v724
    %888 = vst.msk [vmem:[#allocation2 + $0x1e0] sm:$0xff] %vm827, %v729
    %889 = vst.msk [vmem:[#allocation2 + $0x1e8] sm:$0xff] %vm827, %v734
    %890 = vst.msk [vmem:[#allocation2 + $0x1f0] sm:$0xff] %vm827, %v739
    %891 = vst.msk [vmem:[#allocation2 + $0x1f8] sm:$0xff] %vm827, %v744
    %892 = vst.msk [vmem:[#allocation2 + $0x200] sm:$0xff] %vm827, %v749
    %893 = vst.msk [vmem:[#allocation2 + $0x208] sm:$0xff] %vm827, %v754
    %894 = vst.msk [vmem:[#allocation2 + $0x210] sm:$0xff] %vm827, %v759
    %895 = vst.msk [vmem:[#allocation2 + $0x218] sm:$0xff] %vm827, %v764
    %896 = vst.msk [vmem:[#allocation2 + $0x220] sm:$0xff] %vm827, %v769
    %897 = vst.msk [vmem:[#allocation2 + $0x228] sm:$0xff] %vm827, %v774
    %898 = vst.msk [vmem:[#allocation2 + $0x230] sm:$0xff] %vm827, %v779
    %899 = vst.msk [vmem:[#allocation2 + $0x238] sm:$0xff] %vm827, %v784
    %900 = vst.msk [vmem:[#allocation2 + $0x240] sm:$0xff] %vm827, %v789
    %901 = vst.msk [vmem:[#allocation2 + $0x248] sm:$0xff] %vm827, %v794
    %902 = vst.msk [vmem:[#allocation2 + $0x250] sm:$0xff] %vm827, %v799
    %903 = vst.msk [vmem:[#allocation2 + $0x258] sm:$0xff] %vm827, %v804
    %904 = vst.msk [vmem:[#allocation2 + $0x260] sm:$0xff] %vm827, %v809
    %905 = vst.msk [vmem:[#allocation2 + $0x268] sm:$0xff] %vm827, %v814
    %906 = vst.msk [vmem:[#allocation2 + $0x270] sm:$0xff] %vm827, %v819
    %907 = vst.msk [vmem:[#allocation2 + $0x278] sm:$0xff] %vm827, %v824
    %v908 = vld [vmem:[#allocation2] sm:$0xff]
    %v909 = vld [vmem:[#allocation2 + $0x8] sm:$0xff]
    %v910 = vld [vmem:[#allocation2 + $0x10] sm:$0xff]
    %v911 = vld [vmem:[#allocation2 + $0x18] sm:$0xff]
    %v912 = vld [vmem:[#allocation2 + $0x20] sm:$0xff]
    %v913 = vld [vmem:[#allocation2 + $0x28] sm:$0xff]
    %v914 = vld [vmem:[#allocation2 + $0x30] sm:$0xff]
    %v915 = vld [vmem:[#allocation2 + $0x38] sm:$0xff]
    %v916 = vld [vmem:[%s2] sm:$0xff]
    %v917 = vld [vmem:[%s2 + $0x8] sm:$0xff]
    %v918 = vld [vmem:[%s2 + $0x10] sm:$0xff]
    %v919 = vld [vmem:[#allocation2 + $0x40] sm:$0xff]
    %v920 = vld [vmem:[#allocation2 + $0x48] sm:$0xff]
    %v921 = vld [vmem:[#allocation2 + $0x50] sm:$0xff]
    %v922 = vld [vmem:[#allocation2 + $0x58] sm:$0xff]
    %v923 = vld [vmem:[#allocation2 + $0x60] sm:$0xff]
    %v924 = vld [vmem:[#allocation2 + $0x68] sm:$0xff]
    %v925 = vld [vmem:[#allocation2 + $0x70] sm:$0xff]
    %v926 = vld [vmem:[#allocation2 + $0x78] sm:$0xff]
    %s927 = scalar_lea.vmem %s2, 24
    %v928 = vld [vmem:[%s927] sm:$0xff]
    %v929 = vld [vmem:[%s927 + $0x8] sm:$0xff]
    %v930 = vld [vmem:[%s927 + $0x10] sm:$0xff]
    %v932 = vsel %vm827, %v919, 0
    %v935 = vsel %vm827, %v920, 0
    %v938 = vsel %vm827, %v921, 0
    %v941 = vsel %vm827, %v922, 0
    %v944 = vsel %vm827, %v923, 0
    %v947 = vsel %vm827, %v924, 0
    %v950 = vsel %vm827, %v925, 0
    %v953 = vsel %vm827, %v926, 0
    %955 = vmatprep.subr.mxu0 0.0
    %956 = vmatpush1.msra.mxu0 %v928
    %957 = vmatprep.subr.mxu0 0.0
    %958 = vmatpush1.msra.mxu0 %v929
    %959 = vmatprep.subr.mxu0 0.0
    %960 = vmatpush1.msra.mxu0 %v930
    %961 = vmatprep.subr.mxu0 0.0
    %962 = vmatpush1.msra.mxu0 0.0
    %963 = vmatprep.subr.mxu0 0.0
    %964 = vmatpush1.msra.mxu0 0.0
    %965 = vmatprep.subr.mxu0 0.0
    %966 = vmatpush1.msra.mxu0 0.0
    %967 = vmatprep.subr.mxu0 0.0
    %968 = vmatpush1.msra.mxu0 0.0
    %969 = vmatprep.subr.mxu0 0.0
    %970 = vmatpush1.msra.mxu0 0.0
    %971 = vmatprep.subr.mxu0 0.0
    %972 = vmatpush1.msra.mxu0 0.0
    %973 = vmatprep.subr.mxu0 0.0
    %974 = vmatpush1.msra.mxu0 0.0
    %975 = vmatprep.subr.mxu0 0.0
    %976 = vmatpush1.msra.mxu0 0.0
    %977 = vmatprep.subr.mxu0 0.0
    %978 = vmatpush1.msra.mxu0 0.0
    %979 = vmatprep.subr.mxu0 0.0
    %980 = vmatpush1.msra.mxu0 0.0
    %981 = vmatprep.subr.mxu0 0.0
    %982 = vmatpush1.msra.mxu0 0.0
    %983 = vmatprep.subr.mxu0 0.0
    %984 = vmatpush1.msra.mxu0 0.0
    %985 = vmatprep.subr.mxu0 0.0
    %986 = vmatpush1.msra.mxu0 0.0
    %987 = vmatprep.subr.mxu0 0.0
    %988 = vmatpush1.msra.mxu0 0.0
    %989 = vmatprep.subr.mxu0 0.0
    %990 = vmatpush1.msra.mxu0 0.0
    %991 = vmatprep.subr.mxu0 0.0
    %992 = vmatpush1.msra.mxu0 0.0
    %993 = vmatprep.subr.mxu0 0.0
    %994 = vmatpush1.msra.mxu0 0.0
    %995 = vmatprep.subr.mxu0 0.0
    %996 = vmatpush1.msra.mxu0 0.0
    %997 = vmatprep.subr.mxu0 0.0
    %998 = vmatpush1.msra.mxu0 0.0
    %999 = vmatprep.subr.mxu0 0.0
    %1000 = vmatpush1.msra.mxu0 0.0
    %1001 = vmatprep.subr.mxu0 0.0
    %1002 = vmatpush1.msra.mxu0 0.0
    %1003 = vmatprep.subr.mxu0 0.0
    %1004 = vmatpush1.msra.mxu0 0.0
    %1005 = vmatprep.subr.mxu0 0.0
    %1006 = vmatpush1.msra.mxu0 0.0
    %1007 = vmatprep.subr.mxu0 0.0
    %1008 = vmatpush1.msra.mxu0 0.0
    %1009 = vmatprep.subr.mxu0 0.0
    %1010 = vmatpush1.msra.mxu0 0.0
    %1011 = vmatprep.subr.mxu0 0.0
    %1012 = vmatpush1.msra.mxu0 0.0
    %1013 = vmatprep.subr.mxu0 0.0
    %1014 = vmatpush1.msra.mxu0 0.0
    %1015 = vmatprep.subr.mxu0 0.0
    %1016 = vmatpush1.msra.mxu0 0.0
    %1017 = vmatprep.subr.mxu0 0.0
    %1018 = vmatpush1.msra.mxu0 0.0
    %1019 = vmatprep.mubr.f32.mxu0 0.0
    %1020 = vmatmul.mubr.f32.gmra.mrb[0].mxu0 %v932
    %v1021 = vpop.f32.mrb[0].mxu0
    %v1022 = vadd.f32 0.0, %v1021
    %v1023 = vpop.f32.mrb[0].mxu0
    %1024 = vmatprep.mubr.f32.mxu0 0.0
    %1025 = vmatmul.mubr.f32.gmra.mrb[0].mxu0 %v935
    %v1026 = vpop.f32.mrb[0].mxu0
    %v1027 = vadd.f32 0.0, %v1026
    %v1028 = vpop.f32.mrb[0].mxu0
    %1029 = vmatprep.mubr.f32.mxu0 0.0
    %1030 = vmatmul.mubr.f32.gmra.mrb[0].mxu0 %v938
    %v1031 = vpop.f32.mrb[0].mxu0
    %v1032 = vadd.f32 0.0, %v1031
    %v1033 = vpop.f32.mrb[0].mxu0
    %1034 = vmatprep.mubr.f32.mxu0 0.0
    %1035 = vmatmul.mubr.f32.gmra.mrb[0].mxu0 %v941
    %v1036 = vpop.f32.mrb[0].mxu0
    %v1037 = vadd.f32 0.0, %v1036
    %v1038 = vpop.f32.mrb[0].mxu0
    %1039 = vmatprep.mubr.f32.mxu0 0.0
    %1040 = vmatmul.mubr.f32.gmra.mrb[0].mxu0 %v944
    %v1041 = vpop.f32.mrb[0].mxu0
    %v1042 = vadd.f32 0.0, %v1041
    %v1043 = vpop.f32.mrb[0].mxu0
    %1044 = vmatprep.mubr.f32.mxu0 0.0
    %1045 = vmatmul.mubr.f32.gmra.mrb[0].mxu0 %v947
    %v1046 = vpop.f32.mrb[0].mxu0
    %v1047 = vadd.f32 0.0, %v1046
    %v1048 = vpop.f32.mrb[0].mxu0
    %1049 = vmatprep.mubr.f32.mxu0 0.0
    %1050 = vmatmul.mubr.f32.gmra.mrb[0].mxu0 %v950
    %v1051 = vpop.f32.mrb[0].mxu0
    %v1052 = vadd.f32 0.0, %v1051
    %v1053 = vpop.f32.mrb[0].mxu0
    %1054 = vmatprep.mubr.f32.mxu0 0.0
    %1055 = vmatmul.mubr.f32.gmra.mrb[0].mxu0 %v953
    %v1056 = vpop.f32.mrb[0].mxu0
    %v1057 = vadd.f32 0.0, %v1056
    %v1058 = vpop.f32.mrb[0].mxu0
    %1059 = vdwg.mxu0
    %v1061 = vsel %vm827, %v908, 0
    %v1064 = vsel %vm827, %v909, 0
    %v1067 = vsel %vm827, %v910, 0
    %v1070 = vsel %vm827, %v911, 0
    %v1073 = vsel %vm827, %v912, 0
    %v1076 = vsel %vm827, %v913, 0
    %v1079 = vsel %vm827, %v914, 0
    %v1082 = vsel %vm827, %v915, 0
    %1084 = vmatprep.subr.mxu0 0.0
    %1085 = vmatpush1.msra.mxu0 %v916
    %1086 = vmatprep.subr.mxu0 0.0
    %1087 = vmatpush1.msra.mxu0 %v917
    %1088 = vmatprep.subr.mxu0 0.0
    %1089 = vmatpush1.msra.mxu0 %v918
    %1090 = vmatprep.subr.mxu0 0.0
    %1091 = vmatpush1.msra.mxu0 0.0
    %1092 = vmatprep.subr.mxu0 0.0
    %1093 = vmatpush1.msra.mxu0 0.0
    %1094 = vmatprep.subr.mxu0 0.0
    %1095 = vmatpush1.msra.mxu0 0.0
    %1096 = vmatprep.subr.mxu0 0.0
    %1097 = vmatpush1.msra.mxu0 0.0
    %1098 = vmatprep.subr.mxu0 0.0
    %1099 = vmatpush1.msra.mxu0 0.0
    %1100 = vmatprep.subr.mxu0 0.0
    %1101 = vmatpush1.msra.mxu0 0.0
    %1102 = vmatprep.subr.mxu0 0.0
    %1103 = vmatpush1.msra.mxu0 0.0
    %1104 = vmatprep.subr.mxu0 0.0
    %1105 = vmatpush1.msra.mxu0 0.0
    %1106 = vmatprep.subr.mxu0 0.0
    %1107 = vmatpush1.msra.mxu0 0.0
    %1108 = vmatprep.subr.mxu0 0.0
    %1109 = vmatpush1.msra.mxu0 0.0
    %1110 = vmatprep.subr.mxu0 0.0
    %1111 = vmatpush1.msra.mxu0 0.0
    %1112 = vmatprep.subr.mxu0 0.0
    %1113 = vmatpush1.msra.mxu0 0.0
    %1114 = vmatprep.subr.mxu0 0.0
    %1115 = vmatpush1.msra.mxu0 0.0
    %1116 = vmatprep.subr.mxu0 0.0
    %1117 = vmatpush1.msra.mxu0 0.0
    %1118 = vmatprep.subr.mxu0 0.0
    %1119 = vmatpush1.msra.mxu0 0.0
    %1120 = vmatprep.subr.mxu0 0.0
    %1121 = vmatpush1.msra.mxu0 0.0
    %1122 = vmatprep.subr.mxu0 0.0
    %1123 = vmatpush1.msra.mxu0 0.0
    %1124 = vmatprep.subr.mxu0 0.0
    %1125 = vmatpush1.msra.mxu0 0.0
    %1126 = vmatprep.subr.mxu0 0.0
    %1127 = vmatpush1.msra.mxu0 0.0
    %1128 = vmatprep.subr.mxu0 0.0
    %1129 = vmatpush1.msra.mxu0 0.0
    %1130 = vmatprep.subr.mxu0 0.0
    %1131 = vmatpush1.msra.mxu0 0.0
    %1132 = vmatprep.subr.mxu0 0.0
    %1133 = vmatpush1.msra.mxu0 0.0
    %1134 = vmatprep.subr.mxu0 0.0
    %1135 = vmatpush1.msra.mxu0 0.0
    %1136 = vmatprep.subr.mxu0 0.0
    %1137 = vmatpush1.msra.mxu0 0.0
    %1138 = vmatprep.subr.mxu0 0.0
    %1139 = vmatpush1.msra.mxu0 0.0
    %1140 = vmatprep.subr.mxu0 0.0
    %1141 = vmatpush1.msra.mxu0 0.0
    %1142 = vmatprep.subr.mxu0 0.0
    %1143 = vmatpush1.msra.mxu0 0.0
    %1144 = vmatprep.subr.mxu0 0.0
    %1145 = vmatpush1.msra.mxu0 0.0
    %1146 = vmatprep.subr.mxu0 0.0
    %1147 = vmatpush1.msra.mxu0 0.0
    %1148 = vmatprep.mubr.f32.mxu0 0.0
    %1149 = vmatmul.mubr.f32.gmra.mrb[0].mxu0 %v1061
    %v1150 = vpop.f32.mrb[0].mxu0
    %v1151 = vadd.f32 %v1022, %v1150
    %v1152 = vpop.f32.mrb[0].mxu0
    %1153 = vmatprep.mubr.f32.mxu0 0.0
    %1154 = vmatmul.mubr.f32.gmra.mrb[0].mxu0 %v1064
    %v1155 = vpop.f32.mrb[0].mxu0
    %v1156 = vadd.f32 %v1027, %v1155
    %v1157 = vpop.f32.mrb[0].mxu0
    %1158 = vmatprep.mubr.f32.mxu0 0.0
    %1159 = vmatmul.mubr.f32.gmra.mrb[0].mxu0 %v1067
    %v1160 = vpop.f32.mrb[0].mxu0
    %v1161 = vadd.f32 %v1032, %v1160
    %v1162 = vpop.f32.mrb[0].mxu0
    %1163 = vmatprep.mubr.f32.mxu0 0.0
    %1164 = vmatmul.mubr.f32.gmra.mrb[0].mxu0 %v1070
    %v1165 = vpop.f32.mrb[0].mxu0
    %v1166 = vadd.f32 %v1037, %v1165
    %v1167 = vpop.f32.mrb[0].mxu0
    %1168 = vmatprep.mubr.f32.mxu0 0.0
    %1169 = vmatmul.mubr.f32.gmra.mrb[0].mxu0 %v1073
    %v1170 = vpop.f32.mrb[0].mxu0
    %v1171 = vadd.f32 %v1042, %v1170
    %v1172 = vpop.f32.mrb[0].mxu0
    %1173 = vmatprep.mubr.f32.mxu0 0.0
    %1174 = vmatmul.mubr.f32.gmra.mrb[0].mxu0 %v1076
    %v1175 = vpop.f32.mrb[0].mxu0
    %v1176 = vadd.f32 %v1047, %v1175
    %v1177 = vpop.f32.mrb[0].mxu0
    %1178 = vmatprep.mubr.f32.mxu0 0.0
    %1179 = vmatmul.mubr.f32.gmra.mrb[0].mxu0 %v1079
    %v1180 = vpop.f32.mrb[0].mxu0
    %v1181 = vadd.f32 %v1052, %v1180
    %v1182 = vpop.f32.mrb[0].mxu0
    %1183 = vmatprep.mubr.f32.mxu0 0.0
    %1184 = vmatmul.mubr.f32.gmra.mrb[0].mxu0 %v1082
    %v1185 = vpop.f32.mrb[0].mxu0
    %v1186 = vadd.f32 %v1057, %v1185
    %v1187 = vpop.f32.mrb[0].mxu0
    %1188 = vdwg.mxu0
    %v1189 = vld [vmem:[#allocation2 + $0x80] sm:$0xff]
    %v1190 = vld [vmem:[#allocation2 + $0x88] sm:$0xff]
    %v1191 = vld [vmem:[#allocation2 + $0x90] sm:$0xff]
    %v1192 = vld [vmem:[#allocation2 + $0x98] sm:$0xff]
    %v1193 = vld [vmem:[#allocation2 + $0xa0] sm:$0xff]
    %v1194 = vld [vmem:[#allocation2 + $0xa8] sm:$0xff]
    %v1195 = vld [vmem:[#allocation2 + $0xb0] sm:$0xff]
    %v1196 = vld [vmem:[#allocation2 + $0xb8] sm:$0xff]
    %s1197 = scalar_lea.vmem %s2, 48
    %v1198 = vld [vmem:[%s1197] sm:$0xff]
    %v1199 = vld [vmem:[%s1197 + $0x8] sm:$0xff]
    %v1200 = vld [vmem:[%s1197 + $0x10] sm:$0xff]
    %v1202 = vsel %vm827, %v1189, 0
    %v1205 = vsel %vm827, %v1190, 0
    %v1208 = vsel %vm827, %v1191, 0
    %v1211 = vsel %vm827, %v1192, 0
    %v1214 = vsel %vm827, %v1193, 0
    %v1217 = vsel %vm827, %v1194, 0
    %v1220 = vsel %vm827, %v1195, 0
    %v1223 = vsel %vm827, %v1196, 0
    %1225 = vmatprep.subr.mxu0 0.0
    %1226 = vmatpush1.msra.mxu0 %v1198
    %1227 = vmatprep.subr.mxu0 0.0
    %1228 = vmatpush1.msra.mxu0 %v1199
    %1229 = vmatprep.subr.mxu0 0.0
    %1230 = vmatpush1.msra.mxu0 %v1200
    %1231 = vmatprep.subr.mxu0 0.0
    %1232 = vmatpush1.msra.mxu0 0.0
    %1233 = vmatprep.subr.mxu0 0.0
    %1234 = vmatpush1.msra.mxu0 0.0
    %1235 = vmatprep.subr.mxu0 0.0
    %1236 = vmatpush1.msra.mxu0 0.0
    %1237 = vmatprep.subr.mxu0 0.0
    %1238 = vmatpush1.msra.mxu0 0.0
    %1239 = vmatprep.subr.mxu0 0.0
    %1240 = vmatpush1.msra.mxu0 0.0
    %1241 = vmatprep.subr.mxu0 0.0
    %1242 = vmatpush1.msra.mxu0 0.0
    %1243 = vmatprep.subr.mxu0 0.0
    %1244 = vmatpush1.msra.mxu0 0.0
    %1245 = vmatprep.subr.mxu0 0.0
    %1246 = vmatpush1.msra.mxu0 0.0
    %1247 = vmatprep.subr.mxu0 0.0
    %1248 = vmatpush1.msra.mxu0 0.0
    %1249 = vmatprep.subr.mxu0 0.0
    %1250 = vmatpush1.msra.mxu0 0.0
    %1251 = vmatprep.subr.mxu0 0.0
    %1252 = vmatpush1.msra.mxu0 0.0
    %1253 = vmatprep.subr.mxu0 0.0
    %1254 = vmatpush1.msra.mxu0 0.0
    %1255 = vmatprep.subr.mxu0 0.0
    %1256 = vmatpush1.msra.mxu0 0.0
    %1257 = vmatprep.subr.mxu0 0.0
    %1258 = vmatpush1.msra.mxu0 0.0
    %1259 = vmatprep.subr.mxu0 0.0
    %1260 = vmatpush1.msra.mxu0 0.0
    %1261 = vmatprep.subr.mxu0 0.0
    %1262 = vmatpush1.msra.mxu0 0.0
    %1263 = vmatprep.subr.mxu0 0.0
    %1264 = vmatpush1.msra.mxu0 0.0
    %1265 = vmatprep.subr.mxu0 0.0
    %1266 = vmatpush1.msra.mxu0 0.0
    %1267 = vmatprep.subr.mxu0 0.0
    %1268 = vmatpush1.msra.mxu0 0.0
    %1269 = vmatprep.subr.mxu0 0.0
    %1270 = vmatpush1.msra.mxu0 0.0
    %1271 = vmatprep.subr.mxu0 0.0
    %1272 = vmatpush1.msra.mxu0 0.0
    %1273 = vmatprep.subr.mxu0 0.0
    %1274 = vmatpush1.msra.mxu0 0.0
    %1275 = vmatprep.subr.mxu0 0.0
    %1276 = vmatpush1.msra.mxu0 0.0
    %1277 = vmatprep.subr.mxu0 0.0
    %1278 = vmatpush1.msra.mxu0 0.0
    %1279 = vmatprep.subr.mxu0 0.0
    %1280 = vmatpush1.msra.mxu0 0.0
    %1281 = vmatprep.subr.mxu0 0.0
    %1282 = vmatpush1.msra.mxu0 0.0
    %1283 = vmatprep.subr.mxu0 0.0
    %1284 = vmatpush1.msra.mxu0 0.0
    %1285 = vmatprep.subr.mxu0 0.0
    %1286 = vmatpush1.msra.mxu0 0.0
    %1287 = vmatprep.subr.mxu0 0.0
    %1288 = vmatpush1.msra.mxu0 0.0
    %1289 = vmatprep.mubr.f32.mxu0 0.0
    %1290 = vmatmul.mubr.f32.gmra.mrb[0].mxu0 %v1202
    %v1291 = vpop.f32.mrb[0].mxu0
    %v1292 = vadd.f32 0.0, %v1291
    %v1293 = vpop.f32.mrb[0].mxu0
    %1294 = vmatprep.mubr.f32.mxu0 0.0
    %1295 = vmatmul.mubr.f32.gmra.mrb[0].mxu0 %v1205
    %v1296 = vpop.f32.mrb[0].mxu0
    %v1297 = vadd.f32 0.0, %v1296
    %v1298 = vpop.f32.mrb[0].mxu0
    %1299 = vmatprep.mubr.f32.mxu0 0.0
    %1300 = vmatmul.mubr.f32.gmra.mrb[0].mxu0 %v1208
    %v1301 = vpop.f32.mrb[0].mxu0
    %v1302 = vadd.f32 0.0, %v1301
    %v1303 = vpop.f32.mrb[0].mxu0
    %1304 = vmatprep.mubr.f32.mxu0 0.0
    %1305 = vmatmul.mubr.f32.gmra.mrb[0].mxu0 %v1211
    %v1306 = vpop.f32.mrb[0].mxu0
    %v1307 = vadd.f32 0.0, %v1306
    %v1308 = vpop.f32.mrb[0].mxu0
    %1309 = vmatprep.mubr.f32.mxu0 0.0
    %1310 = vmatmul.mubr.f32.gmra.mrb[0].mxu0 %v1214
    %v1311 = vpop.f32.mrb[0].mxu0
    %v1312 = vadd.f32 0.0, %v1311
    %v1313 = vpop.f32.mrb[0].mxu0
    %1314 = vmatprep.mubr.f32.mxu0 0.0
    %1315 = vmatmul.mubr.f32.gmra.mrb[0].mxu0 %v1217
    %v1316 = vpop.f32.mrb[0].mxu0
    %v1317 = vadd.f32 0.0, %v1316
    %v1318 = vpop.f32.mrb[0].mxu0
    %1319 = vmatprep.mubr.f32.mxu0 0.0
    %1320 = vmatmul.mubr.f32.gmra.mrb[0].mxu0 %v1220
    %v1321 = vpop.f32.mrb[0].mxu0
    %v1322 = vadd.f32 0.0, %v1321
    %v1323 = vpop.f32.mrb[0].mxu0
    %1324 = vmatprep.mubr.f32.mxu0 0.0
    %1325 = vmatmul.mubr.f32.gmra.mrb[0].mxu0 %v1223
    %v1326 = vpop.f32.mrb[0].mxu0
    %v1327 = vadd.f32 0.0, %v1326
    %v1328 = vpop.f32.mrb[0].mxu0
    %1329 = vdwg.mxu0
    %v1330 = vadd.f32 %v1151, %v1292
    %v1331 = vadd.f32 %v1156, %v1297
    %v1332 = vadd.f32 %v1161, %v1302
    %v1333 = vadd.f32 %v1166, %v1307
    %v1334 = vadd.f32 %v1171, %v1312
    %v1335 = vadd.f32 %v1176, %v1317
    %v1336 = vadd.f32 %v1181, %v1322
    %v1337 = vadd.f32 %v1186, %v1327
    %v1338 = vld [vmem:[#allocation2 + $0xc0] sm:$0xff]
    %v1339 = vld [vmem:[#allocation2 + $0xc8] sm:$0xff]
    %v1340 = vld [vmem:[#allocation2 + $0xd0] sm:$0xff]
    %v1341 = vld [vmem:[#allocation2 + $0xd8] sm:$0xff]
    %v1342 = vld [vmem:[#allocation2 + $0xe0] sm:$0xff]
    %v1343 = vld [vmem:[#allocation2 + $0xe8] sm:$0xff]
    %v1344 = vld [vmem:[#allocation2 + $0xf0] sm:$0xff]
    %v1345 = vld [vmem:[#allocation2 + $0xf8] sm:$0xff]
    %s1346 = scalar_lea.vmem %s2, 72
    %v1347 = vld [vmem:[%s1346] sm:$0xff]
    %v1348 = vld [vmem:[%s1346 + $0x8] sm:$0xff]
    %v1349 = vld [vmem:[%s1346 + $0x10] sm:$0xff]
    %v1351 = vsel %vm827, %v1338, 0
    %v1354 = vsel %vm827, %v1339, 0
    %v1357 = vsel %vm827, %v1340, 0
    %v1360 = vsel %vm827, %v1341, 0
    %v1363 = vsel %vm827, %v1342, 0
    %v1366 = vsel %vm827, %v1343, 0
    %v1369 = vsel %vm827, %v1344, 0
    %v1372 = vsel %vm827, %v1345, 0
    %1374 = vmatprep.subr.mxu0 0.0
    %1375 = vmatpush1.msra.mxu0 %v1347
    %1376 = vmatprep.subr.mxu0 0.0
    %1377 = vmatpush1.msra.mxu0 %v1348
    %1378 = vmatprep.subr.mxu0 0.0
    %1379 = vmatpush1.msra.mxu0 %v1349
    %1380 = vmatprep.subr.mxu0 0.0
    %1381 = vmatpush1.msra.mxu0 0.0
    %1382 = vmatprep.subr.mxu0 0.0
    %1383 = vmatpush1.msra.mxu0 0.0
    %1384 = vmatprep.subr.mxu0 0.0
    %1385 = vmatpush1.msra.mxu0 0.0
    %1386 = vmatprep.subr.mxu0 0.0
    %1387 = vmatpush1.msra.mxu0 0.0
    %1388 = vmatprep.subr.mxu0 0.0
    %1389 = vmatpush1.msra.mxu0 0.0
    %1390 = vmatprep.subr.mxu0 0.0
    %1391 = vmatpush1.msra.mxu0 0.0
    %1392 = vmatprep.subr.mxu0 0.0
    %1393 = vmatpush1.msra.mxu0 0.0
    %1394 = vmatprep.subr.mxu0 0.0
    %1395 = vmatpush1.msra.mxu0 0.0
    %1396 = vmatprep.subr.mxu0 0.0
    %1397 = vmatpush1.msra.mxu0 0.0
    %1398 = vmatprep.subr.mxu0 0.0
    %1399 = vmatpush1.msra.mxu0 0.0
    %1400 = vmatprep.subr.mxu0 0.0
    %1401 = vmatpush1.msra.mxu0 0.0
    %1402 = vmatprep.subr.mxu0 0.0
    %1403 = vmatpush1.msra.mxu0 0.0
    %1404 = vmatprep.subr.mxu0 0.0
    %1405 = vmatpush1.msra.mxu0 0.0
    %1406 = vmatprep.subr.mxu0 0.0
    %1407 = vmatpush1.msra.mxu0 0.0
    %1408 = vmatprep.subr.mxu0 0.0
    %1409 = vmatpush1.msra.mxu0 0.0
    %1410 = vmatprep.subr.mxu0 0.0
    %1411 = vmatpush1.msra.mxu0 0.0
    %1412 = vmatprep.subr.mxu0 0.0
    %1413 = vmatpush1.msra.mxu0 0.0
    %1414 = vmatprep.subr.mxu0 0.0
    %1415 = vmatpush1.msra.mxu0 0.0
    %1416 = vmatprep.subr.mxu0 0.0
    %1417 = vmatpush1.msra.mxu0 0.0
    %1418 = vmatprep.subr.mxu0 0.0
    %1419 = vmatpush1.msra.mxu0 0.0
    %1420 = vmatprep.subr.mxu0 0.0
    %1421 = vmatpush1.msra.mxu0 0.0
    %1422 = vmatprep.subr.mxu0 0.0
    %1423 = vmatpush1.msra.mxu0 0.0
    %1424 = vmatprep.subr.mxu0 0.0
    %1425 = vmatpush1.msra.mxu0 0.0
    %1426 = vmatprep.subr.mxu0 0.0
    %1427 = vmatpush1.msra.mxu0 0.0
    %1428 = vmatprep.subr.mxu0 0.0
    %1429 = vmatpush1.msra.mxu0 0.0
    %1430 = vmatprep.subr.mxu0 0.0
    %1431 = vmatpush1.msra.mxu0 0.0
    %1432 = vmatprep.subr.mxu0 0.0
    %1433 = vmatpush1.msra.mxu0 0.0
    %1434 = vmatprep.subr.mxu0 0.0
    %1435 = vmatpush1.msra.mxu0 0.0
    %1436 = vmatprep.subr.mxu0 0.0
    %1437 = vmatpush1.msra.mxu0 0.0
    %1438 = vmatprep.mubr.f32.mxu0 0.0
    %1439 = vmatmul.mubr.f32.gmra.mrb[0].mxu0 %v1351
    %v1440 = vpop.f32.mrb[0].mxu0
    %v1441 = vadd.f32 0.0, %v1440
    %v1442 = vpop.f32.mrb[0].mxu0
    %1443 = vmatprep.mubr.f32.mxu0 0.0
    %1444 = vmatmul.mubr.f32.gmra.mrb[0].mxu0 %v1354
    %v1445 = vpop.f32.mrb[0].mxu0
    %v1446 = vadd.f32 0.0, %v1445
    %v1447 = vpop.f32.mrb[0].mxu0
    %1448 = vmatprep.mubr.f32.mxu0 0.0
    %1449 = vmatmul.mubr.f32.gmra.mrb[0].mxu0 %v1357
    %v1450 = vpop.f32.mrb[0].mxu0
    %v1451 = vadd.f32 0.0, %v1450
    %v1452 = vpop.f32.mrb[0].mxu0
    %1453 = vmatprep.mubr.f32.mxu0 0.0
    %1454 = vmatmul.mubr.f32.gmra.mrb[0].mxu0 %v1360
    %v1455 = vpop.f32.mrb[0].mxu0
    %v1456 = vadd.f32 0.0, %v1455
    %v1457 = vpop.f32.mrb[0].mxu0
    %1458 = vmatprep.mubr.f32.mxu0 0.0
    %1459 = vmatmul.mubr.f32.gmra.mrb[0].mxu0 %v1363
    %v1460 = vpop.f32.mrb[0].mxu0
    %v1461 = vadd.f32 0.0, %v1460
    %v1462 = vpop.f32.mrb[0].mxu0
    %1463 = vmatprep.mubr.f32.mxu0 0.0
    %1464 = vmatmul.mubr.f32.gmra.mrb[0].mxu0 %v1366
    %v1465 = vpop.f32.mrb[0].mxu0
    %v1466 = vadd.f32 0.0, %v1465
    %v1467 = vpop.f32.mrb[0].mxu0
    %1468 = vmatprep.mubr.f32.mxu0 0.0
    %1469 = vmatmul.mubr.f32.gmra.mrb[0].mxu0 %v1369
    %v1470 = vpop.f32.mrb[0].mxu0
    %v1471 = vadd.f32 0.0, %v1470
    %v1472 = vpop.f32.mrb[0].mxu0
    %1473 = vmatprep.mubr.f32.mxu0 0.0
    %1474 = vmatmul.mubr.f32.gmra.mrb[0].mxu0 %v1372
    %v1475 = vpop.f32.mrb[0].mxu0
    %v1476 = vadd.f32 0.0, %v1475
    %v1477 = vpop.f32.mrb[0].mxu0
    %1478 = vdwg.mxu0
    %v1479 = vadd.f32 %v1330, %v1441
    %v1480 = vadd.f32 %v1331, %v1446
    %v1481 = vadd.f32 %v1332, %v1451
    %v1482 = vadd.f32 %v1333, %v1456
    %v1483 = vadd.f32 %v1334, %v1461
    %v1484 = vadd.f32 %v1335, %v1466
    %v1485 = vadd.f32 %v1336, %v1471
    %v1486 = vadd.f32 %v1337, %v1476
    %v1487 = vld [vmem:[#allocation2 + $0x100] sm:$0xff]
    %v1488 = vld [vmem:[#allocation2 + $0x108] sm:$0xff]
    %v1489 = vld [vmem:[#allocation2 + $0x110] sm:$0xff]
    %v1490 = vld [vmem:[#allocation2 + $0x118] sm:$0xff]
    %v1491 = vld [vmem:[#allocation2 + $0x120] sm:$0xff]
    %v1492 = vld [vmem:[#allocation2 + $0x128] sm:$0xff]
    %v1493 = vld [vmem:[#allocation2 + $0x130] sm:$0xff]
    %v1494 = vld [vmem:[#allocation2 + $0x138] sm:$0xff]
    %s1495 = scalar_lea.vmem %s2, 96
    %v1496 = vld [vmem:[%s1495] sm:$0xff]
    %v1497 = vld [vmem:[%s1495 + $0x8] sm:$0xff]
    %v1498 = vld [vmem:[%s1495 + $0x10] sm:$0xff]
    %v1500 = vsel %vm827, %v1487, 0
    %v1503 = vsel %vm827, %v1488, 0
    %v1506 = vsel %vm827, %v1489, 0
    %v1509 = vsel %vm827, %v1490, 0
    %v1512 = vsel %vm827, %v1491, 0
    %v1515 = vsel %vm827, %v1492, 0
    %v1518 = vsel %vm827, %v1493, 0
    %v1521 = vsel %vm827, %v1494, 0
    %1523 = vmatprep.subr.mxu0 0.0
    %1524 = vmatpush1.msra.mxu0 %v1496
    %1525 = vmatprep.subr.mxu0 0.0
    %1526 = vmatpush1.msra.mxu0 %v1497
    %1527 = vmatprep.subr.mxu0 0.0
    %1528 = vmatpush1.msra.mxu0 %v1498
    %1529 = vmatprep.subr.mxu0 0.0
    %1530 = vmatpush1.msra.mxu0 0.0
    %1531 = vmatprep.subr.mxu0 0.0
    %1532 = vmatpush1.msra.mxu0 0.0
    %1533 = vmatprep.subr.mxu0 0.0
    %1534 = vmatpush1.msra.mxu0 0.0
    %1535 = vmatprep.subr.mxu0 0.0
    %1536 = vmatpush1.msra.mxu0 0.0
    %1537 = vmatprep.subr.mxu0 0.0
    %1538 = vmatpush1.msra.mxu0 0.0
    %1539 = vmatprep.subr.mxu0 0.0
    %1540 = vmatpush1.msra.mxu0 0.0
    %1541 = vmatprep.subr.mxu0 0.0
    %1542 = vmatpush1.msra.mxu0 0.0
    %1543 = vmatprep.subr.mxu0 0.0
    %1544 = vmatpush1.msra.mxu0 0.0
    %1545 = vmatprep.subr.mxu0 0.0
    %1546 = vmatpush1.msra.mxu0 0.0
    %1547 = vmatprep.subr.mxu0 0.0
    %1548 = vmatpush1.msra.mxu0 0.0
    %1549 = vmatprep.subr.mxu0 0.0
    %1550 = vmatpush1.msra.mxu0 0.0
    %1551 = vmatprep.subr.mxu0 0.0
    %1552 = vmatpush1.msra.mxu0 0.0
    %1553 = vmatprep.subr.mxu0 0.0
    %1554 = vmatpush1.msra.mxu0 0.0
    %1555 = vmatprep.subr.mxu0 0.0
    %1556 = vmatpush1.msra.mxu0 0.0
    %1557 = vmatprep.subr.mxu0 0.0
    %1558 = vmatpush1.msra.mxu0 0.0
    %1559 = vmatprep.subr.mxu0 0.0
    %1560 = vmatpush1.msra.mxu0 0.0
    %1561 = vmatprep.subr.mxu0 0.0
    %1562 = vmatpush1.msra.mxu0 0.0
    %1563 = vmatprep.subr.mxu0 0.0
    %1564 = vmatpush1.msra.mxu0 0.0
    %1565 = vmatprep.subr.mxu0 0.0
    %1566 = vmatpush1.msra.mxu0 0.0
    %1567 = vmatprep.subr.mxu0 0.0
    %1568 = vmatpush1.msra.mxu0 0.0
    %1569 = vmatprep.subr.mxu0 0.0
    %1570 = vmatpush1.msra.mxu0 0.0
    %1571 = vmatprep.subr.mxu0 0.0
    %1572 = vmatpush1.msra.mxu0 0.0
    %1573 = vmatprep.subr.mxu0 0.0
    %1574 = vmatpush1.msra.mxu0 0.0
    %1575 = vmatprep.subr.mxu0 0.0
    %1576 = vmatpush1.msra.mxu0 0.0
    %1577 = vmatprep.subr.mxu0 0.0
    %1578 = vmatpush1.msra.mxu0 0.0
    %1579 = vmatprep.subr.mxu0 0.0
    %1580 = vmatpush1.msra.mxu0 0.0
    %1581 = vmatprep.subr.mxu0 0.0
    %1582 = vmatpush1.msra.mxu0 0.0
    %1583 = vmatprep.subr.mxu0 0.0
    %1584 = vmatpush1.msra.mxu0 0.0
    %1585 = vmatprep.subr.mxu0 0.0
    %1586 = vmatpush1.msra.mxu0 0.0
    %1587 = vmatprep.mubr.f32.mxu0 0.0
    %1588 = vmatmul.mubr.f32.gmra.mrb[0].mxu0 %v1500
    %v1589 = vpop.f32.mrb[0].mxu0
    %v1590 = vadd.f32 0.0, %v1589
    %v1591 = vpop.f32.mrb[0].mxu0
    %1592 = vmatprep.mubr.f32.mxu0 0.0
    %1593 = vmatmul.mubr.f32.gmra.mrb[0].mxu0 %v1503
    %v1594 = vpop.f32.mrb[0].mxu0
    %v1595 = vadd.f32 0.0, %v1594
    %v1596 = vpop.f32.mrb[0].mxu0
    %1597 = vmatprep.mubr.f32.mxu0 0.0
    %1598 = vmatmul.mubr.f32.gmra.mrb[0].mxu0 %v1506
    %v1599 = vpop.f32.mrb[0].mxu0
    %v1600 = vadd.f32 0.0, %v1599
    %v1601 = vpop.f32.mrb[0].mxu0
    %1602 = vmatprep.mubr.f32.mxu0 0.0
    %1603 = vmatmul.mubr.f32.gmra.mrb[0].mxu0 %v1509
    %v1604 = vpop.f32.mrb[0].mxu0
    %v1605 = vadd.f32 0.0, %v1604
    %v1606 = vpop.f32.mrb[0].mxu0
    %1607 = vmatprep.mubr.f32.mxu0 0.0
    %1608 = vmatmul.mubr.f32.gmra.mrb[0].mxu0 %v1512
    %v1609 = vpop.f32.mrb[0].mxu0
    %v1610 = vadd.f32 0.0, %v1609
    %v1611 = vpop.f32.mrb[0].mxu0
    %1612 = vmatprep.mubr.f32.mxu0 0.0
    %1613 = vmatmul.mubr.f32.gmra.mrb[0].mxu0 %v1515
    %v1614 = vpop.f32.mrb[0].mxu0
    %v1615 = vadd.f32 0.0, %v1614
    %v1616 = vpop.f32.mrb[0].mxu0
    %1617 = vmatprep.mubr.f32.mxu0 0.0
    %1618 = vmatmul.mubr.f32.gmra.mrb[0].mxu0 %v1518
    %v1619 = vpop.f32.mrb[0].mxu0
    %v1620 = vadd.f32 0.0, %v1619
    %v1621 = vpop.f32.mrb[0].mxu0
    %1622 = vmatprep.mubr.f32.mxu0 0.0
    %1623 = vmatmul.mubr.f32.gmra.mrb[0].mxu0 %v1521
    %v1624 = vpop.f32.mrb[0].mxu0
    %v1625 = vadd.f32 0.0, %v1624
    %v1626 = vpop.f32.mrb[0].mxu0
    %1627 = vdwg.mxu0
    %v1628 = vadd.f32 %v1479, %v1590
    %v1629 = vadd.f32 %v1480, %v1595
    %v1630 = vadd.f32 %v1481, %v1600
    %v1631 = vadd.f32 %v1482, %v1605
    %v1632 = vadd.f32 %v1483, %v1610
    %v1633 = vadd.f32 %v1484, %v1615
    %v1634 = vadd.f32 %v1485, %v1620
    %v1635 = vadd.f32 %v1486, %v1625
    %v1636 = vld [vmem:[#allocation2 + $0x140] sm:$0xff]
    %v1637 = vld [vmem:[#allocation2 + $0x148] sm:$0xff]
    %v1638 = vld [vmem:[#allocation2 + $0x150] sm:$0xff]
    %v1639 = vld [vmem:[#allocation2 + $0x158] sm:$0xff]
    %v1640 = vld [vmem:[#allocation2 + $0x160] sm:$0xff]
    %v1641 = vld [vmem:[#allocation2 + $0x168] sm:$0xff]
    %v1642 = vld [vmem:[#allocation2 + $0x170] sm:$0xff]
    %v1643 = vld [vmem:[#allocation2 + $0x178] sm:$0xff]
    %s1644 = scalar_lea.vmem %s2, 120
    %v1645 = vld [vmem:[%s1644] sm:$0xff]
    %v1646 = vld [vmem:[%s1644 + $0x8] sm:$0xff]
    %v1647 = vld [vmem:[%s1644 + $0x10] sm:$0xff]
    %v1649 = vsel %vm827, %v1636, 0
    %v1652 = vsel %vm827, %v1637, 0
    %v1655 = vsel %vm827, %v1638, 0
    %v1658 = vsel %vm827, %v1639, 0
    %v1661 = vsel %vm827, %v1640, 0
    %v1664 = vsel %vm827, %v1641, 0
    %v1667 = vsel %vm827, %v1642, 0
    %v1670 = vsel %vm827, %v1643, 0
    %1672 = vmatprep.subr.mxu0 0.0
    %1673 = vmatpush1.msra.mxu0 %v1645
    %1674 = vmatprep.subr.mxu0 0.0
    %1675 = vmatpush1.msra.mxu0 %v1646
    %1676 = vmatprep.subr.mxu0 0.0
    %1677 = vmatpush1.msra.mxu0 %v1647
    %1678 = vmatprep.subr.mxu0 0.0
    %1679 = vmatpush1.msra.mxu0 0.0
    %1680 = vmatprep.subr.mxu0 0.0
    %1681 = vmatpush1.msra.mxu0 0.0
    %1682 = vmatprep.subr.mxu0 0.0
    %1683 = vmatpush1.msra.mxu0 0.0
    %1684 = vmatprep.subr.mxu0 0.0
    %1685 = vmatpush1.msra.mxu0 0.0
    %1686 = vmatprep.subr.mxu0 0.0
    %1687 = vmatpush1.msra.mxu0 0.0
    %1688 = vmatprep.subr.mxu0 0.0
    %1689 = vmatpush1.msra.mxu0 0.0
    %1690 = vmatprep.subr.mxu0 0.0
    %1691 = vmatpush1.msra.mxu0 0.0
    %1692 = vmatprep.subr.mxu0 0.0
    %1693 = vmatpush1.msra.mxu0 0.0
    %1694 = vmatprep.subr.mxu0 0.0
    %1695 = vmatpush1.msra.mxu0 0.0
    %1696 = vmatprep.subr.mxu0 0.0
    %1697 = vmatpush1.msra.mxu0 0.0
    %1698 = vmatprep.subr.mxu0 0.0
    %1699 = vmatpush1.msra.mxu0 0.0
    %1700 = vmatprep.subr.mxu0 0.0
    %1701 = vmatpush1.msra.mxu0 0.0
    %1702 = vmatprep.subr.mxu0 0.0
    %1703 = vmatpush1.msra.mxu0 0.0
    %1704 = vmatprep.subr.mxu0 0.0
    %1705 = vmatpush1.msra.mxu0 0.0
    %1706 = vmatprep.subr.mxu0 0.0
    %1707 = vmatpush1.msra.mxu0 0.0
    %1708 = vmatprep.subr.mxu0 0.0
    %1709 = vmatpush1.msra.mxu0 0.0
    %1710 = vmatprep.subr.mxu0 0.0
    %1711 = vmatpush1.msra.mxu0 0.0
    %1712 = vmatprep.subr.mxu0 0.0
    %1713 = vmatpush1.msra.mxu0 0.0
    %1714 = vmatprep.subr.mxu0 0.0
    %1715 = vmatpush1.msra.mxu0 0.0
    %1716 = vmatprep.subr.mxu0 0.0
    %1717 = vmatpush1.msra.mxu0 0.0
    %1718 = vmatprep.subr.mxu0 0.0
    %1719 = vmatpush1.msra.mxu0 0.0
    %1720 = vmatprep.subr.mxu0 0.0
    %1721 = vmatpush1.msra.mxu0 0.0
    %1722 = vmatprep.subr.mxu0 0.0
    %1723 = vmatpush1.msra.mxu0 0.0
    %1724 = vmatprep.subr.mxu0 0.0
    %1725 = vmatpush1.msra.mxu0 0.0
    %1726 = vmatprep.subr.mxu0 0.0
    %1727 = vmatpush1.msra.mxu0 0.0
    %1728 = vmatprep.subr.mxu0 0.0
    %1729 = vmatpush1.msra.mxu0 0.0
    %1730 = vmatprep.subr.mxu0 0.0
    %1731 = vmatpush1.msra.mxu0 0.0
    %1732 = vmatprep.subr.mxu0 0.0
    %1733 = vmatpush1.msra.mxu0 0.0
    %1734 = vmatprep.subr.mxu0 0.0
    %1735 = vmatpush1.msra.mxu0 0.0
    %1736 = vmatprep.mubr.f32.mxu0 0.0
    %1737 = vmatmul.mubr.f32.gmra.mrb[0].mxu0 %v1649
    %v1738 = vpop.f32.mrb[0].mxu0
    %v1739 = vadd.f32 0.0, %v1738
    %v1740 = vpop.f32.mrb[0].mxu0
    %1741 = vmatprep.mubr.f32.mxu0 0.0
    %1742 = vmatmul.mubr.f32.gmra.mrb[0].mxu0 %v1652
    %v1743 = vpop.f32.mrb[0].mxu0
    %v1744 = vadd.f32 0.0, %v1743
    %v1745 = vpop.f32.mrb[0].mxu0
    %1746 = vmatprep.mubr.f32.mxu0 0.0
    %1747 = vmatmul.mubr.f32.gmra.mrb[0].mxu0 %v1655
    %v1748 = vpop.f32.mrb[0].mxu0
    %v1749 = vadd.f32 0.0, %v1748
    %v1750 = vpop.f32.mrb[0].mxu0
    %1751 = vmatprep.mubr.f32.mxu0 0.0
    %1752 = vmatmul.mubr.f32.gmra.mrb[0].mxu0 %v1658
    %v1753 = vpop.f32.mrb[0].mxu0
    %v1754 = vadd.f32 0.0, %v1753
    %v1755 = vpop.f32.mrb[0].mxu0
    %1756 = vmatprep.mubr.f32.mxu0 0.0
    %1757 = vmatmul.mubr.f32.gmra.mrb[0].mxu0 %v1661
    %v1758 = vpop.f32.mrb[0].mxu0
    %v1759 = vadd.f32 0.0, %v1758
    %v1760 = vpop.f32.mrb[0].mxu0
    %1761 = vmatprep.mubr.f32.mxu0 0.0
    %1762 = vmatmul.mubr.f32.gmra.mrb[0].mxu0 %v1664
    %v1763 = vpop.f32.mrb[0].mxu0
    %v1764 = vadd.f32 0.0, %v1763
    %v1765 = vpop.f32.mrb[0].mxu0
    %1766 = vmatprep.mubr.f32.mxu0 0.0
    %1767 = vmatmul.mubr.f32.gmra.mrb[0].mxu0 %v1667
    %v1768 = vpop.f32.mrb[0].mxu0
    %v1769 = vadd.f32 0.0, %v1768
    %v1770 = vpop.f32.mrb[0].mxu0
    %1771 = vmatprep.mubr.f32.mxu0 0.0
    %1772 = vmatmul.mubr.f32.gmra.mrb[0].mxu0 %v1670
    %v1773 = vpop.f32.mrb[0].mxu0
    %v1774 = vadd.f32 0.0, %v1773
    %v1775 = vpop.f32.mrb[0].mxu0
    %1776 = vdwg.mxu0
    %v1777 = vadd.f32 %v1628, %v1739
    %v1778 = vadd.f32 %v1629, %v1744
    %v1779 = vadd.f32 %v1630, %v1749
    %v1780 = vadd.f32 %v1631, %v1754
    %v1781 = vadd.f32 %v1632, %v1759
    %v1782 = vadd.f32 %v1633, %v1764
    %v1783 = vadd.f32 %v1634, %v1769
    %v1784 = vadd.f32 %v1635, %v1774
    %v1785 = vld [vmem:[#allocation2 + $0x180] sm:$0xff]
    %v1786 = vld [vmem:[#allocation2 + $0x188] sm:$0xff]
    %v1787 = vld [vmem:[#allocation2 + $0x190] sm:$0xff]
    %v1788 = vld [vmem:[#allocation2 + $0x198] sm:$0xff]
    %v1789 = vld [vmem:[#allocation2 + $0x1a0] sm:$0xff]
    %v1790 = vld [vmem:[#allocation2 + $0x1a8] sm:$0xff]
    %v1791 = vld [vmem:[#allocation2 + $0x1b0] sm:$0xff]
    %v1792 = vld [vmem:[#allocation2 + $0x1b8] sm:$0xff]
    %s1793 = scalar_lea.vmem %s2, 144
    %v1794 = vld [vmem:[%s1793] sm:$0xff]
    %v1795 = vld [vmem:[%s1793 + $0x8] sm:$0xff]
    %v1796 = vld [vmem:[%s1793 + $0x10] sm:$0xff]
    %v1798 = vsel %vm827, %v1785, 0
    %v1801 = vsel %vm827, %v1786, 0
    %v1804 = vsel %vm827, %v1787, 0
    %v1807 = vsel %vm827, %v1788, 0
    %v1810 = vsel %vm827, %v1789, 0
    %v1813 = vsel %vm827, %v1790, 0
    %v1816 = vsel %vm827, %v1791, 0
    %v1819 = vsel %vm827, %v1792, 0
    %1821 = vmatprep.subr.mxu0 0.0
    %1822 = vmatpush1.msra.mxu0 %v1794
    %1823 = vmatprep.subr.mxu0 0.0
    %1824 = vmatpush1.msra.mxu0 %v1795
    %1825 = vmatprep.subr.mxu0 0.0
    %1826 = vmatpush1.msra.mxu0 %v1796
    %1827 = vmatprep.subr.mxu0 0.0
    %1828 = vmatpush1.msra.mxu0 0.0
    %1829 = vmatprep.subr.mxu0 0.0
    %1830 = vmatpush1.msra.mxu0 0.0
    %1831 = vmatprep.subr.mxu0 0.0
    %1832 = vmatpush1.msra.mxu0 0.0
    %1833 = vmatprep.subr.mxu0 0.0
    %1834 = vmatpush1.msra.mxu0 0.0
    %1835 = vmatprep.subr.mxu0 0.0
    %1836 = vmatpush1.msra.mxu0 0.0
    %1837 = vmatprep.subr.mxu0 0.0
    %1838 = vmatpush1.msra.mxu0 0.0
    %1839 = vmatprep.subr.mxu0 0.0
    %1840 = vmatpush1.msra.mxu0 0.0
    %1841 = vmatprep.subr.mxu0 0.0
    %1842 = vmatpush1.msra.mxu0 0.0
    %1843 = vmatprep.subr.mxu0 0.0
    %1844 = vmatpush1.msra.mxu0 0.0
    %1845 = vmatprep.subr.mxu0 0.0
    %1846 = vmatpush1.msra.mxu0 0.0
    %1847 = vmatprep.subr.mxu0 0.0
    %1848 = vmatpush1.msra.mxu0 0.0
    %1849 = vmatprep.subr.mxu0 0.0
    %1850 = vmatpush1.msra.mxu0 0.0
    %1851 = vmatprep.subr.mxu0 0.0
    %1852 = vmatpush1.msra.mxu0 0.0
    %1853 = vmatprep.subr.mxu0 0.0
    %1854 = vmatpush1.msra.mxu0 0.0
    %1855 = vmatprep.subr.mxu0 0.0
    %1856 = vmatpush1.msra.mxu0 0.0
    %1857 = vmatprep.subr.mxu0 0.0
    %1858 = vmatpush1.msra.mxu0 0.0
    %1859 = vmatprep.subr.mxu0 0.0
    %1860 = vmatpush1.msra.mxu0 0.0
    %1861 = vmatprep.subr.mxu0 0.0
    %1862 = vmatpush1.msra.mxu0 0.0
    %1863 = vmatprep.subr.mxu0 0.0
    %1864 = vmatpush1.msra.mxu0 0.0
    %1865 = vmatprep.subr.mxu0 0.0
    %1866 = vmatpush1.msra.mxu0 0.0
    %1867 = vmatprep.subr.mxu0 0.0
    %1868 = vmatpush1.msra.mxu0 0.0
    %1869 = vmatprep.subr.mxu0 0.0
    %1870 = vmatpush1.msra.mxu0 0.0
    %1871 = vmatprep.subr.mxu0 0.0
    %1872 = vmatpush1.msra.mxu0 0.0
    %1873 = vmatprep.subr.mxu0 0.0
    %1874 = vmatpush1.msra.mxu0 0.0
    %1875 = vmatprep.subr.mxu0 0.0
    %1876 = vmatpush1.msra.mxu0 0.0
    %1877 = vmatprep.subr.mxu0 0.0
    %1878 = vmatpush1.msra.mxu0 0.0
    %1879 = vmatprep.subr.mxu0 0.0
    %1880 = vmatpush1.msra.mxu0 0.0
    %1881 = vmatprep.subr.mxu0 0.0
    %1882 = vmatpush1.msra.mxu0 0.0
    %1883 = vmatprep.subr.mxu0 0.0
    %1884 = vmatpush1.msra.mxu0 0.0
    %1885 = vmatprep.mubr.f32.mxu0 0.0
    %1886 = vmatmul.mubr.f32.gmra.mrb[0].mxu0 %v1798
    %v1887 = vpop.f32.mrb[0].mxu0
    %v1888 = vadd.f32 0.0, %v1887
    %v1889 = vpop.f32.mrb[0].mxu0
    %1890 = vmatprep.mubr.f32.mxu0 0.0
    %1891 = vmatmul.mubr.f32.gmra.mrb[0].mxu0 %v1801
    %v1892 = vpop.f32.mrb[0].mxu0
    %v1893 = vadd.f32 0.0, %v1892
    %v1894 = vpop.f32.mrb[0].mxu0
    %1895 = vmatprep.mubr.f32.mxu0 0.0
    %1896 = vmatmul.mubr.f32.gmra.mrb[0].mxu0 %v1804
    %v1897 = vpop.f32.mrb[0].mxu0
    %v1898 = vadd.f32 0.0, %v1897
    %v1899 = vpop.f32.mrb[0].mxu0
    %1900 = vmatprep.mubr.f32.mxu0 0.0
    %1901 = vmatmul.mubr.f32.gmra.mrb[0].mxu0 %v1807
    %v1902 = vpop.f32.mrb[0].mxu0
    %v1903 = vadd.f32 0.0, %v1902
    %v1904 = vpop.f32.mrb[0].mxu0
    %1905 = vmatprep.mubr.f32.mxu0 0.0
    %1906 = vmatmul.mubr.f32.gmra.mrb[0].mxu0 %v1810
    %v1907 = vpop.f32.mrb[0].mxu0
    %v1908 = vadd.f32 0.0, %v1907
    %v1909 = vpop.f32.mrb[0].mxu0
    %1910 = vmatprep.mubr.f32.mxu0 0.0
    %1911 = vmatmul.mubr.f32.gmra.mrb[0].mxu0 %v1813
    %v1912 = vpop.f32.mrb[0].mxu0
    %v1913 = vadd.f32 0.0, %v1912
    %v1914 = vpop.f32.mrb[0].mxu0
    %1915 = vmatprep.mubr.f32.mxu0 0.0
    %1916 = vmatmul.mubr.f32.gmra.mrb[0].mxu0 %v1816
    %v1917 = vpop.f32.mrb[0].mxu0
    %v1918 = vadd.f32 0.0, %v1917
    %v1919 = vpop.f32.mrb[0].mxu0
    %1920 = vmatprep.mubr.f32.mxu0 0.0
    %1921 = vmatmul.mubr.f32.gmra.mrb[0].mxu0 %v1819
    %v1922 = vpop.f32.mrb[0].mxu0
    %v1923 = vadd.f32 0.0, %v1922
    %v1924 = vpop.f32.mrb[0].mxu0
    %1925 = vdwg.mxu0
    %v1926 = vadd.f32 %v1777, %v1888
    %v1927 = vadd.f32 %v1778, %v1893
    %v1928 = vadd.f32 %v1779, %v1898
    %v1929 = vadd.f32 %v1780, %v1903
    %v1930 = vadd.f32 %v1781, %v1908
    %v1931 = vadd.f32 %v1782, %v1913
    %v1932 = vadd.f32 %v1783, %v1918
    %v1933 = vadd.f32 %v1784, %v1923
    %v1934 = vld [vmem:[#allocation2 + $0x1c0] sm:$0xff]
    %v1935 = vld [vmem:[#allocation2 + $0x1c8] sm:$0xff]
    %v1936 = vld [vmem:[#allocation2 + $0x1d0] sm:$0xff]
    %v1937 = vld [vmem:[#allocation2 + $0x1d8] sm:$0xff]
    %v1938 = vld [vmem:[#allocation2 + $0x1e0] sm:$0xff]
    %v1939 = vld [vmem:[#allocation2 + $0x1e8] sm:$0xff]
    %v1940 = vld [vmem:[#allocation2 + $0x1f0] sm:$0xff]
    %v1941 = vld [vmem:[#allocation2 + $0x1f8] sm:$0xff]
    %s1942 = scalar_lea.vmem %s2, 168
    %v1943 = vld [vmem:[%s1942] sm:$0xff]
    %v1944 = vld [vmem:[%s1942 + $0x8] sm:$0xff]
    %v1945 = vld [vmem:[%s1942 + $0x10] sm:$0xff]
    %v1947 = vsel %vm827, %v1934, 0
    %v1950 = vsel %vm827, %v1935, 0
    %v1953 = vsel %vm827, %v1936, 0
    %v1956 = vsel %vm827, %v1937, 0
    %v1959 = vsel %vm827, %v1938, 0
    %v1962 = vsel %vm827, %v1939, 0
    %v1965 = vsel %vm827, %v1940, 0
    %v1968 = vsel %vm827, %v1941, 0
    %1970 = vmatprep.subr.mxu0 0.0
    %1971 = vmatpush1.msra.mxu0 %v1943
    %1972 = vmatprep.subr.mxu0 0.0
    %1973 = vmatpush1.msra.mxu0 %v1944
    %1974 = vmatprep.subr.mxu0 0.0
    %1975 = vmatpush1.msra.mxu0 %v1945
    %1976 = vmatprep.subr.mxu0 0.0
    %1977 = vmatpush1.msra.mxu0 0.0
    %1978 = vmatprep.subr.mxu0 0.0
    %1979 = vmatpush1.msra.mxu0 0.0
    %1980 = vmatprep.subr.mxu0 0.0
    %1981 = vmatpush1.msra.mxu0 0.0
    %1982 = vmatprep.subr.mxu0 0.0
    %1983 = vmatpush1.msra.mxu0 0.0
    %1984 = vmatprep.subr.mxu0 0.0
    %1985 = vmatpush1.msra.mxu0 0.0
    %1986 = vmatprep.subr.mxu0 0.0
    %1987 = vmatpush1.msra.mxu0 0.0
    %1988 = vmatprep.subr.mxu0 0.0
    %1989 = vmatpush1.msra.mxu0 0.0
    %1990 = vmatprep.subr.mxu0 0.0
    %1991 = vmatpush1.msra.mxu0 0.0
    %1992 = vmatprep.subr.mxu0 0.0
    %1993 = vmatpush1.msra.mxu0 0.0
    %1994 = vmatprep.subr.mxu0 0.0
    %1995 = vmatpush1.msra.mxu0 0.0
    %1996 = vmatprep.subr.mxu0 0.0
    %1997 = vmatpush1.msra.mxu0 0.0
    %1998 = vmatprep.subr.mxu0 0.0
    %1999 = vmatpush1.msra.mxu0 0.0
    %2000 = vmatprep.subr.mxu0 0.0
    %2001 = vmatpush1.msra.mxu0 0.0
    %2002 = vmatprep.subr.mxu0 0.0
    %2003 = vmatpush1.msra.mxu0 0.0
    %2004 = vmatprep.subr.mxu0 0.0
    %2005 = vmatpush1.msra.mxu0 0.0
    %2006 = vmatprep.subr.mxu0 0.0
    %2007 = vmatpush1.msra.mxu0 0.0
    %2008 = vmatprep.subr.mxu0 0.0
    %2009 = vmatpush1.msra.mxu0 0.0
    %2010 = vmatprep.subr.mxu0 0.0
    %2011 = vmatpush1.msra.mxu0 0.0
    %2012 = vmatprep.subr.mxu0 0.0
    %2013 = vmatpush1.msra.mxu0 0.0
    %2014 = vmatprep.subr.mxu0 0.0
    %2015 = vmatpush1.msra.mxu0 0.0
    %2016 = vmatprep.subr.mxu0 0.0
    %2017 = vmatpush1.msra.mxu0 0.0
    %2018 = vmatprep.subr.mxu0 0.0
    %2019 = vmatpush1.msra.mxu0 0.0
    %2020 = vmatprep.subr.mxu0 0.0
    %2021 = vmatpush1.msra.mxu0 0.0
    %2022 = vmatprep.subr.mxu0 0.0
    %2023 = vmatpush1.msra.mxu0 0.0
    %2024 = vmatprep.subr.mxu0 0.0
    %2025 = vmatpush1.msra.mxu0 0.0
    %2026 = vmatprep.subr.mxu0 0.0
    %2027 = vmatpush1.msra.mxu0 0.0
    %2028 = vmatprep.subr.mxu0 0.0
    %2029 = vmatpush1.msra.mxu0 0.0
    %2030 = vmatprep.subr.mxu0 0.0
    %2031 = vmatpush1.msra.mxu0 0.0
    %2032 = vmatprep.subr.mxu0 0.0
    %2033 = vmatpush1.msra.mxu0 0.0
    %2034 = vmatprep.mubr.f32.mxu0 0.0
    %2035 = vmatmul.mubr.f32.gmra.mrb[0].mxu0 %v1947
    %v2036 = vpop.f32.mrb[0].mxu0
    %v2037 = vadd.f32 0.0, %v2036
    %v2038 = vpop.f32.mrb[0].mxu0
    %2039 = vmatprep.mubr.f32.mxu0 0.0
    %2040 = vmatmul.mubr.f32.gmra.mrb[0].mxu0 %v1950
    %v2041 = vpop.f32.mrb[0].mxu0
    %v2042 = vadd.f32 0.0, %v2041
    %v2043 = vpop.f32.mrb[0].mxu0
    %2044 = vmatprep.mubr.f32.mxu0 0.0
    %2045 = vmatmul.mubr.f32.gmra.mrb[0].mxu0 %v1953
    %v2046 = vpop.f32.mrb[0].mxu0
    %v2047 = vadd.f32 0.0, %v2046
    %v2048 = vpop.f32.mrb[0].mxu0
    %2049 = vmatprep.mubr.f32.mxu0 0.0
    %2050 = vmatmul.mubr.f32.gmra.mrb[0].mxu0 %v1956
    %v2051 = vpop.f32.mrb[0].mxu0
    %v2052 = vadd.f32 0.0, %v2051
    %v2053 = vpop.f32.mrb[0].mxu0
    %2054 = vmatprep.mubr.f32.mxu0 0.0
    %2055 = vmatmul.mubr.f32.gmra.mrb[0].mxu0 %v1959
    %v2056 = vpop.f32.mrb[0].mxu0
    %v2057 = vadd.f32 0.0, %v2056
    %v2058 = vpop.f32.mrb[0].mxu0
    %2059 = vmatprep.mubr.f32.mxu0 0.0
    %2060 = vmatmul.mubr.f32.gmra.mrb[0].mxu0 %v1962
    %v2061 = vpop.f32.mrb[0].mxu0
    %v2062 = vadd.f32 0.0, %v2061
    %v2063 = vpop.f32.mrb[0].mxu0
    %2064 = vmatprep.mubr.f32.mxu0 0.0
    %2065 = vmatmul.mubr.f32.gmra.mrb[0].mxu0 %v1965
    %v2066 = vpop.f32.mrb[0].mxu0
    %v2067 = vadd.f32 0.0, %v2066
    %v2068 = vpop.f32.mrb[0].mxu0
    %2069 = vmatprep.mubr.f32.mxu0 0.0
    %2070 = vmatmul.mubr.f32.gmra.mrb[0].mxu0 %v1968
    %v2071 = vpop.f32.mrb[0].mxu0
    %v2072 = vadd.f32 0.0, %v2071
    %v2073 = vpop.f32.mrb[0].mxu0
    %2074 = vdwg.mxu0
    %v2075 = vadd.f32 %v1926, %v2037
    %v2076 = vadd.f32 %v1927, %v2042
    %v2077 = vadd.f32 %v1928, %v2047
    %v2078 = vadd.f32 %v1929, %v2052
    %v2079 = vadd.f32 %v1930, %v2057
    %v2080 = vadd.f32 %v1931, %v2062
    %v2081 = vadd.f32 %v1932, %v2067
    %v2082 = vadd.f32 %v1933, %v2072
    %v2083 = vld [vmem:[#allocation2 + $0x200] sm:$0xff]
    %v2084 = vld [vmem:[#allocation2 + $0x208] sm:$0xff]
    %v2085 = vld [vmem:[#allocation2 + $0x210] sm:$0xff]
    %v2086 = vld [vmem:[#allocation2 + $0x218] sm:$0xff]
    %v2087 = vld [vmem:[#allocation2 + $0x220] sm:$0xff]
    %v2088 = vld [vmem:[#allocation2 + $0x228] sm:$0xff]
    %v2089 = vld [vmem:[#allocation2 + $0x230] sm:$0xff]
    %v2090 = vld [vmem:[#allocation2 + $0x238] sm:$0xff]
    %s2091 = scalar_lea.vmem %s2, 192
    %v2092 = vld [vmem:[%s2091] sm:$0xff]
    %v2093 = vld [vmem:[%s2091 + $0x8] sm:$0xff]
    %v2094 = vld [vmem:[%s2091 + $0x10] sm:$0xff]
    %v2096 = vsel %vm827, %v2083, 0
    %v2099 = vsel %vm827, %v2084, 0
    %v2102 = vsel %vm827, %v2085, 0
    %v2105 = vsel %vm827, %v2086, 0
    %v2108 = vsel %vm827, %v2087, 0
    %v2111 = vsel %vm827, %v2088, 0
    %v2114 = vsel %vm827, %v2089, 0
    %v2117 = vsel %vm827, %v2090, 0
    %2119 = vmatprep.subr.mxu0 0.0
    %2120 = vmatpush1.msra.mxu0 %v2092
    %2121 = vmatprep.subr.mxu0 0.0
    %2122 = vmatpush1.msra.mxu0 %v2093
    %2123 = vmatprep.subr.mxu0 0.0
    %2124 = vmatpush1.msra.mxu0 %v2094
    %2125 = vmatprep.subr.mxu0 0.0
    %2126 = vmatpush1.msra.mxu0 0.0
    %2127 = vmatprep.subr.mxu0 0.0
    %2128 = vmatpush1.msra.mxu0 0.0
    %2129 = vmatprep.subr.mxu0 0.0
    %2130 = vmatpush1.msra.mxu0 0.0
    %2131 = vmatprep.subr.mxu0 0.0
    %2132 = vmatpush1.msra.mxu0 0.0
    %2133 = vmatprep.subr.mxu0 0.0
    %2134 = vmatpush1.msra.mxu0 0.0
    %2135 = vmatprep.subr.mxu0 0.0
    %2136 = vmatpush1.msra.mxu0 0.0
    %2137 = vmatprep.subr.mxu0 0.0
    %2138 = vmatpush1.msra.mxu0 0.0
    %2139 = vmatprep.subr.mxu0 0.0
    %2140 = vmatpush1.msra.mxu0 0.0
    %2141 = vmatprep.subr.mxu0 0.0
    %2142 = vmatpush1.msra.mxu0 0.0
    %2143 = vmatprep.subr.mxu0 0.0
    %2144 = vmatpush1.msra.mxu0 0.0
    %2145 = vmatprep.subr.mxu0 0.0
    %2146 = vmatpush1.msra.mxu0 0.0
    %2147 = vmatprep.subr.mxu0 0.0
    %2148 = vmatpush1.msra.mxu0 0.0
    %2149 = vmatprep.subr.mxu0 0.0
    %2150 = vmatpush1.msra.mxu0 0.0
    %2151 = vmatprep.subr.mxu0 0.0
    %2152 = vmatpush1.msra.mxu0 0.0
    %2153 = vmatprep.subr.mxu0 0.0
    %2154 = vmatpush1.msra.mxu0 0.0
    %2155 = vmatprep.subr.mxu0 0.0
    %2156 = vmatpush1.msra.mxu0 0.0
    %2157 = vmatprep.subr.mxu0 0.0
    %2158 = vmatpush1.msra.mxu0 0.0
    %2159 = vmatprep.subr.mxu0 0.0
    %2160 = vmatpush1.msra.mxu0 0.0
    %2161 = vmatprep.subr.mxu0 0.0
    %2162 = vmatpush1.msra.mxu0 0.0
    %2163 = vmatprep.subr.mxu0 0.0
    %2164 = vmatpush1.msra.mxu0 0.0
    %2165 = vmatprep.subr.mxu0 0.0
    %2166 = vmatpush1.msra.mxu0 0.0
    %2167 = vmatprep.subr.mxu0 0.0
    %2168 = vmatpush1.msra.mxu0 0.0
    %2169 = vmatprep.subr.mxu0 0.0
    %2170 = vmatpush1.msra.mxu0 0.0
    %2171 = vmatprep.subr.mxu0 0.0
    %2172 = vmatpush1.msra.mxu0 0.0
    %2173 = vmatprep.subr.mxu0 0.0
    %2174 = vmatpush1.msra.mxu0 0.0
    %2175 = vmatprep.subr.mxu0 0.0
    %2176 = vmatpush1.msra.mxu0 0.0
    %2177 = vmatprep.subr.mxu0 0.0
    %2178 = vmatpush1.msra.mxu0 0.0
    %2179 = vmatprep.subr.mxu0 0.0
    %2180 = vmatpush1.msra.mxu0 0.0
    %2181 = vmatprep.subr.mxu0 0.0
    %2182 = vmatpush1.msra.mxu0 0.0
    %2183 = vmatprep.mubr.f32.mxu0 0.0
    %2184 = vmatmul.mubr.f32.gmra.mrb[0].mxu0 %v2096
    %v2185 = vpop.f32.mrb[0].mxu0
    %v2186 = vadd.f32 0.0, %v2185
    %v2187 = vpop.f32.mrb[0].mxu0
    %2188 = vmatprep.mubr.f32.mxu0 0.0
    %2189 = vmatmul.mubr.f32.gmra.mrb[0].mxu0 %v2099
    %v2190 = vpop.f32.mrb[0].mxu0
    %v2191 = vadd.f32 0.0, %v2190
    %v2192 = vpop.f32.mrb[0].mxu0
    %2193 = vmatprep.mubr.f32.mxu0 0.0
    %2194 = vmatmul.mubr.f32.gmra.mrb[0].mxu0 %v2102
    %v2195 = vpop.f32.mrb[0].mxu0
    %v2196 = vadd.f32 0.0, %v2195
    %v2197 = vpop.f32.mrb[0].mxu0
    %2198 = vmatprep.mubr.f32.mxu0 0.0
    %2199 = vmatmul.mubr.f32.gmra.mrb[0].mxu0 %v2105
    %v2200 = vpop.f32.mrb[0].mxu0
    %v2201 = vadd.f32 0.0, %v2200
    %v2202 = vpop.f32.mrb[0].mxu0
    %2203 = vmatprep.mubr.f32.mxu0 0.0
    %2204 = vmatmul.mubr.f32.gmra.mrb[0].mxu0 %v2108
    %v2205 = vpop.f32.mrb[0].mxu0
    %v2206 = vadd.f32 0.0, %v2205
    %v2207 = vpop.f32.mrb[0].mxu0
    %2208 = vmatprep.mubr.f32.mxu0 0.0
    %2209 = vmatmul.mubr.f32.gmra.mrb[0].mxu0 %v2111
    %v2210 = vpop.f32.mrb[0].mxu0
    %v2211 = vadd.f32 0.0, %v2210
    %v2212 = vpop.f32.mrb[0].mxu0
    %2213 = vmatprep.mubr.f32.mxu0 0.0
    %2214 = vmatmul.mubr.f32.gmra.mrb[0].mxu0 %v2114
    %v2215 = vpop.f32.mrb[0].mxu0
    %v2216 = vadd.f32 0.0, %v2215
    %v2217 = vpop.f32.mrb[0].mxu0
    %2218 = vmatprep.mubr.f32.mxu0 0.0
    %2219 = vmatmul.mubr.f32.gmra.mrb[0].mxu0 %v2117
    %v2220 = vpop.f32.mrb[0].mxu0
    %v2221 = vadd.f32 0.0, %v2220
    %v2222 = vpop.f32.mrb[0].mxu0
    %2223 = vdwg.mxu0
    %v2224 = vadd.f32 %v2075, %v2186
    %v2225 = vadd.f32 %v2076, %v2191
    %v2226 = vadd.f32 %v2077, %v2196
    %v2227 = vadd.f32 %v2078, %v2201
    %v2228 = vadd.f32 %v2079, %v2206
    %v2229 = vadd.f32 %v2080, %v2211
    %v2230 = vadd.f32 %v2081, %v2216
    %v2231 = vadd.f32 %v2082, %v2221
    %v2232 = vld [vmem:[#allocation2 + $0x240] sm:$0xff]
    %v2233 = vld [vmem:[#allocation2 + $0x248] sm:$0xff]
    %v2234 = vld [vmem:[#allocation2 + $0x250] sm:$0xff]
    %v2235 = vld [vmem:[#allocation2 + $0x258] sm:$0xff]
    %v2236 = vld [vmem:[#allocation2 + $0x260] sm:$0xff]
    %v2237 = vld [vmem:[#allocation2 + $0x268] sm:$0xff]
    %v2238 = vld [vmem:[#allocation2 + $0x270] sm:$0xff]
    %v2239 = vld [vmem:[#allocation2 + $0x278] sm:$0xff]
    %s2240 = scalar_lea.vmem %s2, 216
    %v2241 = vld [vmem:[%s2240] sm:$0xff]
    %v2242 = vld [vmem:[%s2240 + $0x8] sm:$0xff]
    %v2243 = vld [vmem:[%s2240 + $0x10] sm:$0xff]
    %v2245 = vsel %vm827, %v2232, 0
    %v2248 = vsel %vm827, %v2233, 0
    %v2251 = vsel %vm827, %v2234, 0
    %v2254 = vsel %vm827, %v2235, 0
    %v2257 = vsel %vm827, %v2236, 0
    %v2260 = vsel %vm827, %v2237, 0
    %v2263 = vsel %vm827, %v2238, 0
    %v2266 = vsel %vm827, %v2239, 0
    %2268 = vmatprep.subr.mxu0 0.0
    %2269 = vmatpush1.msra.mxu0 %v2241
    %2270 = vmatprep.subr.mxu0 0.0
    %2271 = vmatpush1.msra.mxu0 %v2242
    %2272 = vmatprep.subr.mxu0 0.0
    %2273 = vmatpush1.msra.mxu0 %v2243
    %2274 = vmatprep.subr.mxu0 0.0
    %2275 = vmatpush1.msra.mxu0 0.0
    %2276 = vmatprep.subr.mxu0 0.0
    %2277 = vmatpush1.msra.mxu0 0.0
    %2278 = vmatprep.subr.mxu0 0.0
    %2279 = vmatpush1.msra.mxu0 0.0
    %2280 = vmatprep.subr.mxu0 0.0
    %2281 = vmatpush1.msra.mxu0 0.0
    %2282 = vmatprep.subr.mxu0 0.0
    %2283 = vmatpush1.msra.mxu0 0.0
    %2284 = vmatprep.subr.mxu0 0.0
    %2285 = vmatpush1.msra.mxu0 0.0
    %2286 = vmatprep.subr.mxu0 0.0
    %2287 = vmatpush1.msra.mxu0 0.0
    %2288 = vmatprep.subr.mxu0 0.0
    %2289 = vmatpush1.msra.mxu0 0.0
    %2290 = vmatprep.subr.mxu0 0.0
    %2291 = vmatpush1.msra.mxu0 0.0
    %2292 = vmatprep.subr.mxu0 0.0
    %2293 = vmatpush1.msra.mxu0 0.0
    %2294 = vmatprep.subr.mxu0 0.0
    %2295 = vmatpush1.msra.mxu0 0.0
    %2296 = vmatprep.subr.mxu0 0.0
    %2297 = vmatpush1.msra.mxu0 0.0
    %2298 = vmatprep.subr.mxu0 0.0
    %2299 = vmatpush1.msra.mxu0 0.0
    %2300 = vmatprep.subr.mxu0 0.0
    %2301 = vmatpush1.msra.mxu0 0.0
    %2302 = vmatprep.subr.mxu0 0.0
    %2303 = vmatpush1.msra.mxu0 0.0
    %2304 = vmatprep.subr.mxu0 0.0
    %2305 = vmatpush1.msra.mxu0 0.0
    %2306 = vmatprep.subr.mxu0 0.0
    %2307 = vmatpush1.msra.mxu0 0.0
    %2308 = vmatprep.subr.mxu0 0.0
    %2309 = vmatpush1.msra.mxu0 0.0
    %2310 = vmatprep.subr.mxu0 0.0
    %2311 = vmatpush1.msra.mxu0 0.0
    %2312 = vmatprep.subr.mxu0 0.0
    %2313 = vmatpush1.msra.mxu0 0.0
    %2314 = vmatprep.subr.mxu0 0.0
    %2315 = vmatpush1.msra.mxu0 0.0
    %2316 = vmatprep.subr.mxu0 0.0
    %2317 = vmatpush1.msra.mxu0 0.0
    %2318 = vmatprep.subr.mxu0 0.0
    %2319 = vmatpush1.msra.mxu0 0.0
    %2320 = vmatprep.subr.mxu0 0.0
    %2321 = vmatpush1.msra.mxu0 0.0
    %2322 = vmatprep.subr.mxu0 0.0
    %2323 = vmatpush1.msra.mxu0 0.0
    %2324 = vmatprep.subr.mxu0 0.0
    %2325 = vmatpush1.msra.mxu0 0.0
    %2326 = vmatprep.subr.mxu0 0.0
    %2327 = vmatpush1.msra.mxu0 0.0
    %2328 = vmatprep.subr.mxu0 0.0
    %2329 = vmatpush1.msra.mxu0 0.0
    %2330 = vmatprep.subr.mxu0 0.0
    %2331 = vmatpush1.msra.mxu0 0.0
    %2332 = vmatprep.mubr.f32.mxu0 0.0
    %2333 = vmatmul.mubr.f32.gmra.mrb[0].mxu0 %v2245
    %v2334 = vpop.f32.mrb[0].mxu0
    %v2335 = vadd.f32 0.0, %v2334
    %v2336 = vpop.f32.mrb[0].mxu0
    %2337 = vmatprep.mubr.f32.mxu0 0.0
    %2338 = vmatmul.mubr.f32.gmra.mrb[0].mxu0 %v2248
    %v2339 = vpop.f32.mrb[0].mxu0
    %v2340 = vadd.f32 0.0, %v2339
    %v2341 = vpop.f32.mrb[0].mxu0
    %2342 = vmatprep.mubr.f32.mxu0 0.0
    %2343 = vmatmul.mubr.f32.gmra.mrb[0].mxu0 %v2251
    %v2344 = vpop.f32.mrb[0].mxu0
    %v2345 = vadd.f32 0.0, %v2344
    %v2346 = vpop.f32.mrb[0].mxu0
    %2347 = vmatprep.mubr.f32.mxu0 0.0
    %2348 = vmatmul.mubr.f32.gmra.mrb[0].mxu0 %v2254
    %v2349 = vpop.f32.mrb[0].mxu0
    %v2350 = vadd.f32 0.0, %v2349
    %v2351 = vpop.f32.mrb[0].mxu0
    %2352 = vmatprep.mubr.f32.mxu0 0.0
    %2353 = vmatmul.mubr.f32.gmra.mrb[0].mxu0 %v2257
    %v2354 = vpop.f32.mrb[0].mxu0
    %v2355 = vadd.f32 0.0, %v2354
    %v2356 = vpop.f32.mrb[0].mxu0
    %2357 = vmatprep.mubr.f32.mxu0 0.0
    %2358 = vmatmul.mubr.f32.gmra.mrb[0].mxu0 %v2260
    %v2359 = vpop.f32.mrb[0].mxu0
    %v2360 = vadd.f32 0.0, %v2359
    %v2361 = vpop.f32.mrb[0].mxu0
    %2362 = vmatprep.mubr.f32.mxu0 0.0
    %2363 = vmatmul.mubr.f32.gmra.mrb[0].mxu0 %v2263
    %v2364 = vpop.f32.mrb[0].mxu0
    %v2365 = vadd.f32 0.0, %v2364
    %v2366 = vpop.f32.mrb[0].mxu0
    %2367 = vmatprep.mubr.f32.mxu0 0.0
    %2368 = vmatmul.mubr.f32.gmra.mrb[0].mxu0 %v2266
    %v2369 = vpop.f32.mrb[0].mxu0
    %v2370 = vadd.f32 0.0, %v2369
    %v2371 = vpop.f32.mrb[0].mxu0
    %2372 = vdwg.mxu0
    %v2373 = vadd.f32 %v2224, %v2335
    %v2374 = vadd.f32 %v2225, %v2340
    %v2375 = vadd.f32 %v2226, %v2345
    %v2376 = vadd.f32 %v2227, %v2350
    %v2377 = vadd.f32 %v2228, %v2355
    %v2378 = vadd.f32 %v2229, %v2360
    %v2379 = vadd.f32 %v2230, %v2365
    %v2380 = vadd.f32 %v2231, %v2370
    %v2381 = vld [vmem:[%s3] sm:$0x1]
    %v2383 = vlaneseq
    %v2384 = vshrl.u32 %v2383, 7
    %v2385 = vsub.s32 0, %v2384
    %v2386 = vrot.slane %v2381, %v2385
    %v2388 = vadd.f32 %v2373, %v2386
    %v2389 = vadd.f32 %v2374, %v2386
    %v2390 = vadd.f32 %v2375, %v2386
    %v2391 = vadd.f32 %v2376, %v2386
    %v2392 = vadd.f32 %v2377, %v2386
    %v2393 = vadd.f32 %v2378, %v2386
    %v2394 = vadd.f32 %v2379, %v2386
    %v2395 = vadd.f32 %v2380, %v2386
    %v2396 = vmax.f32 %v2388, 0.0
    %v2397 = vmax.f32 %v2389, 0.0
    %v2398 = vmax.f32 %v2390, 0.0
    %v2399 = vmax.f32 %v2391, 0.0
    %v2400 = vmax.f32 %v2392, 0.0
    %v2401 = vmax.f32 %v2393, 0.0
    %v2402 = vmax.f32 %v2394, 0.0
    %v2403 = vmax.f32 %v2395, 0.0
    %v2404 = vld [vmem:[%s4] sm:$0xff]
    %v2405 = vld [vmem:[%s4 + $0x8] sm:$0xff]
    %v2406 = vld [vmem:[%s4 + $0x10] sm:$0xff]
    %v2407 = vld [vmem:[%s4 + $0x18] sm:$0xff]
    %v2408 = vld [vmem:[%s4 + $0x20] sm:$0xff]
    %v2409 = vld [vmem:[%s4 + $0x28] sm:$0xff]
    %v2410 = vld [vmem:[%s4 + $0x30] sm:$0xff]
    %v2411 = vld [vmem:[%s4 + $0x38] sm:$0xff]
    %v2412 = vld [vmem:[%s4 + $0x40] sm:$0xff]
    %v2413 = vld [vmem:[%s4 + $0x48] sm:$0xff]
    %v2414 = vld [vmem:[%s4 + $0x50] sm:$0xff]
    %v2415 = vld [vmem:[%s4 + $0x58] sm:$0xff]
    %v2416 = vld [vmem:[%s4 + $0x60] sm:$0xff]
    %v2417 = vld [vmem:[%s4 + $0x68] sm:$0xff]
    %v2418 = vld [vmem:[%s4 + $0x70] sm:$0xff]
    %v2419 = vld [vmem:[%s4 + $0x78] sm:$0xff]
    %2420 = vxpose.xlu0.b32.start [1/16] %v2396, 128
    %2421 = vxpose.xlu0.b32.cont [2/16] %v2397, 128
    %2422 = vxpose.xlu0.b32.cont [3/16] %v2398, 128
    %2423 = vxpose.xlu0.b32.cont [4/16] %v2399, 128
    %2424 = vxpose.xlu0.b32.cont [5/16] %v2400, 128
    %2425 = vxpose.xlu0.b32.cont [6/16] %v2401, 128
    %2426 = vxpose.xlu0.b32.cont [7/16] %v2402, 128
    %2427 = vxpose.xlu0.b32.cont [8/16] %v2403, 128
    %2428 = vxpose.xlu0.b32.cont [9/16] 0.0, 128
    %2429 = vxpose.xlu0.b32.cont [10/16] 0.0, 128
    %2430 = vxpose.xlu0.b32.cont [11/16] 0.0, 128
    %2431 = vxpose.xlu0.b32.cont [12/16] 0.0, 128
    %2432 = vxpose.xlu0.b32.cont [13/16] 0.0, 128
    %2433 = vxpose.xlu0.b32.cont [14/16] 0.0, 128
    %2434 = vxpose.xlu0.b32.cont [15/16] 0.0, 128
    %2435 = vxpose.xlu0.b32.end [16/16] 0.0, 128
    %v2436 = vpop.trf.xlu0
    %v2437 = vpop.trf.xlu0
    %v2438 = vpop.trf.xlu0
    %v2439 = vpop.trf.xlu0
    %v2440 = vpop.trf.xlu0
    %v2441 = vpop.trf.xlu0
    %v2442 = vpop.trf.xlu0
    %v2443 = vpop.trf.xlu0
    %v2444 = vpop.trf.xlu0
    %v2445 = vpop.trf.xlu0
    %v2446 = vpop.trf.xlu0
    %v2447 = vpop.trf.xlu0
    %v2448 = vpop.trf.xlu0
    %v2449 = vpop.trf.xlu0
    %v2450 = vpop.trf.xlu0
    %v2451 = vpop.trf.xlu0
    %v2453 = vsel %vm121, %v2436, 0
    %v2456 = vsel %vm121, %v2437, 0
    %v2459 = vsel %vm121, %v2438, 0
    %v2462 = vsel %vm121, %v2439, 0
    %2464 = vmatprep.subr.mxu0 %v2405
    %2465 = vmatpush1.msra.mxu0 %v2404
    %2466 = vmatprep.subr.mxu0 %v2407
    %2467 = vmatpush1.msra.mxu0 %v2406
    %2468 = vmatprep.subr.mxu0 %v2409
    %2469 = vmatpush1.msra.mxu0 %v2408
    %2470 = vmatprep.subr.mxu0 %v2411
    %2471 = vmatpush1.msra.mxu0 %v2410
    %2472 = vmatprep.subr.mxu0 %v2413
    %2473 = vmatpush1.msra.mxu0 %v2412
    %2474 = vmatprep.subr.mxu0 %v2415
    %2475 = vmatpush1.msra.mxu0 %v2414
    %2476 = vmatprep.subr.mxu0 %v2417
    %2477 = vmatpush1.msra.mxu0 %v2416
    %2478 = vmatprep.subr.mxu0 %v2419
    %2479 = vmatpush1.msra.mxu0 %v2418
    %2480 = vmatprep.subr.mxu0 0.0
    %2481 = vmatpush1.msra.mxu0 0.0
    %2482 = vmatprep.subr.mxu0 0.0
    %2483 = vmatpush1.msra.mxu0 0.0
    %2484 = vmatprep.subr.mxu0 0.0
    %2485 = vmatpush1.msra.mxu0 0.0
    %2486 = vmatprep.subr.mxu0 0.0
    %2487 = vmatpush1.msra.mxu0 0.0
    %2488 = vmatprep.subr.mxu0 0.0
    %2489 = vmatpush1.msra.mxu0 0.0
    %2490 = vmatprep.subr.mxu0 0.0
    %2491 = vmatpush1.msra.mxu0 0.0
    %2492 = vmatprep.subr.mxu0 0.0
    %2493 = vmatpush1.msra.mxu0 0.0
    %2494 = vmatprep.subr.mxu0 0.0
    %2495 = vmatpush1.msra.mxu0 0.0
    %2496 = vmatprep.subr.mxu0 0.0
    %2497 = vmatpush1.msra.mxu0 0.0
    %2498 = vmatprep.subr.mxu0 0.0
    %2499 = vmatpush1.msra.mxu0 0.0
    %2500 = vmatprep.subr.mxu0 0.0
    %2501 = vmatpush1.msra.mxu0 0.0
    %2502 = vmatprep.subr.mxu0 0.0
    %2503 = vmatpush1.msra.mxu0 0.0
    %2504 = vmatprep.subr.mxu0 0.0
    %2505 = vmatpush1.msra.mxu0 0.0
    %2506 = vmatprep.subr.mxu0 0.0
    %2507 = vmatpush1.msra.mxu0 0.0
    %2508 = vmatprep.subr.mxu0 0.0
    %2509 = vmatpush1.msra.mxu0 0.0
    %2510 = vmatprep.subr.mxu0 0.0
    %2511 = vmatpush1.msra.mxu0 0.0
    %2512 = vmatprep.subr.mxu0 0.0
    %2513 = vmatpush1.msra.mxu0 0.0
    %2514 = vmatprep.subr.mxu0 0.0
    %2515 = vmatpush1.msra.mxu0 0.0
    %2516 = vmatprep.subr.mxu0 0.0
    %2517 = vmatpush1.msra.mxu0 0.0
    %2518 = vmatprep.subr.mxu0 0.0
    %2519 = vmatpush1.msra.mxu0 0.0
    %2520 = vmatprep.subr.mxu0 0.0
    %2521 = vmatpush1.msra.mxu0 0.0
    %2522 = vmatprep.subr.mxu0 0.0
    %2523 = vmatpush1.msra.mxu0 0.0
    %2524 = vmatprep.subr.mxu0 0.0
    %2525 = vmatpush1.msra.mxu0 0.0
    %2526 = vmatprep.subr.mxu0 0.0
    %2527 = vmatpush1.msra.mxu0 0.0
    %2528 = vmatprep.mubr.f32.mxu0 0.0
    %2529 = vmatmul.mubr.f32.gmra.mrb[0].mxu0 %v2453
    %v2530 = vpop.f32.mrb[0].mxu0
    %v2531 = vadd.f32 0.0, %v2530
    %v2532 = vpop.f32.mrb[0].mxu0
    %v2533 = vadd.f32 0.0, %v2532
    %2534 = vmatprep.mubr.f32.mxu0 0.0
    %2535 = vmatmul.mubr.f32.gmra.mrb[0].mxu0 %v2456
    %v2536 = vpop.f32.mrb[0].mxu0
    %v2537 = vadd.f32 0.0, %v2536
    %v2538 = vpop.f32.mrb[0].mxu0
    %v2539 = vadd.f32 0.0, %v2538
    %2540 = vmatprep.mubr.f32.mxu0 0.0
    %2541 = vmatmul.mubr.f32.gmra.mrb[0].mxu0 %v2459
    %v2542 = vpop.f32.mrb[0].mxu0
    %v2543 = vadd.f32 0.0, %v2542
    %v2544 = vpop.f32.mrb[0].mxu0
    %v2545 = vadd.f32 0.0, %v2544
    %2546 = vmatprep.mubr.f32.mxu0 0.0
    %2547 = vmatmul.mubr.f32.gmra.mrb[0].mxu0 %v2462
    %v2548 = vpop.f32.mrb[0].mxu0
    %v2549 = vadd.f32 0.0, %v2548
    %v2550 = vpop.f32.mrb[0].mxu0
    %v2551 = vadd.f32 0.0, %v2550
    %2552 = vdwg.mxu0
    %v2553 = vld [vmem:[%s5] sm:$0xff]
    %v2554 = vld [vmem:[%s5 + $0x8] sm:$0xff]
    %v2555 = vld [vmem:[%s5 + $0x10] sm:$0xff]
    %v2556 = vld [vmem:[%s5 + $0x18] sm:$0xff]
    %v2557 = vld [vmem:[%s5 + $0x20] sm:$0xff]
    %v2558 = vld [vmem:[%s5 + $0x28] sm:$0xff]
    %v2559 = vld [vmem:[%s5 + $0x30] sm:$0x3f]
    %v2560 = vld [vmem:[%s5 + $0x38] sm:$0x3f]
    %v2561 = vmul.f32 %v2531, %v2553
    %v2562 = vmul.f32 %v2533, %v2554
    %v2563 = vmul.f32 %v2537, %v2555
    %v2564 = vmul.f32 %v2539, %v2556
    %v2565 = vmul.f32 %v2543, %v2557
    %v2566 = vmul.f32 %v2545, %v2558
    %v2567 = vmul.f32 %v2549, %v2559
    %v2568 = vmul.f32 %v2551, %v2560
    %v2569 = vld [vmem:[%s6] sm:$0x3]
    %vm2570 = vcmask 244736
    %v2572 = vsel %vm2570, %v2569, 0
    %vm2574 = vcmask 1045504
    %v2576 = vsel %vm2574, %v2567, 0
    %v2579 = vsel %vm2574, %v2568, 0
    %2581 = vmatprep.subr.mxu0 %v2562
    %2582 = vmatpush1.msra.mxu0 %v2561
    %2583 = vmatprep.subr.mxu0 %v2564
    %2584 = vmatpush1.msra.mxu0 %v2563
    %2585 = vmatprep.subr.mxu0 %v2566
    %2586 = vmatpush1.msra.mxu0 %v2565
    %2587 = vmatprep.subr.mxu0 %v2579
    %2588 = vmatpush1.msra.mxu0 %v2576
    %2589 = vmatprep.subr.mxu0 0.0
    %2590 = vmatpush1.msra.mxu0 0.0
    %2591 = vmatprep.subr.mxu0 0.0
    %2592 = vmatpush1.msra.mxu0 0.0
    %2593 = vmatprep.subr.mxu0 0.0
    %2594 = vmatpush1.msra.mxu0 0.0
    %2595 = vmatprep.subr.mxu0 0.0
    %2596 = vmatpush1.msra.mxu0 0.0
    %2597 = vmatprep.subr.mxu0 0.0
    %2598 = vmatpush1.msra.mxu0 0.0
    %2599 = vmatprep.subr.mxu0 0.0
    %2600 = vmatpush1.msra.mxu0 0.0
    %2601 = vmatprep.subr.mxu0 0.0
    %2602 = vmatpush1.msra.mxu0 0.0
    %2603 = vmatprep.subr.mxu0 0.0
    %2604 = vmatpush1.msra.mxu0 0.0
    %2605 = vmatprep.subr.mxu0 0.0
    %2606 = vmatpush1.msra.mxu0 0.0
    %2607 = vmatprep.subr.mxu0 0.0
    %2608 = vmatpush1.msra.mxu0 0.0
    %2609 = vmatprep.subr.mxu0 0.0
    %2610 = vmatpush1.msra.mxu0 0.0
    %2611 = vmatprep.subr.mxu0 0.0
    %2612 = vmatpush1.msra.mxu0 0.0
    %2613 = vmatprep.subr.mxu0 0.0
    %2614 = vmatpush1.msra.mxu0 0.0
    %2615 = vmatprep.subr.mxu0 0.0
    %2616 = vmatpush1.msra.mxu0 0.0
    %2617 = vmatprep.subr.mxu0 0.0
    %2618 = vmatpush1.msra.mxu0 0.0
    %2619 = vmatprep.subr.mxu0 0.0
    %2620 = vmatpush1.msra.mxu0 0.0
    %2621 = vmatprep.subr.mxu0 0.0
    %2622 = vmatpush1.msra.mxu0 0.0
    %2623 = vmatprep.subr.mxu0 0.0
    %2624 = vmatpush1.msra.mxu0 0.0
    %2625 = vmatprep.subr.mxu0 0.0
    %2626 = vmatpush1.msra.mxu0 0.0
    %2627 = vmatprep.subr.mxu0 0.0
    %2628 = vmatpush1.msra.mxu0 0.0
    %2629 = vmatprep.subr.mxu0 0.0
    %2630 = vmatpush1.msra.mxu0 0.0
    %2631 = vmatprep.subr.mxu0 0.0
    %2632 = vmatpush1.msra.mxu0 0.0
    %2633 = vmatprep.subr.mxu0 0.0
    %2634 = vmatpush1.msra.mxu0 0.0
    %2635 = vmatprep.subr.mxu0 0.0
    %2636 = vmatpush1.msra.mxu0 0.0
    %2637 = vmatprep.subr.mxu0 0.0
    %2638 = vmatpush1.msra.mxu0 0.0
    %2639 = vmatprep.subr.mxu0 0.0
    %2640 = vmatpush1.msra.mxu0 0.0
    %2641 = vmatprep.subr.mxu0 0.0
    %2642 = vmatpush1.msra.mxu0 0.0
    %2643 = vmatprep.subr.mxu0 0.0
    %2644 = vmatpush1.msra.mxu0 0.0
    %2645 = vmatprep.mubr.f32.mxu0 0.0
    %2646 = vmatmul.mubr.f32.gmra.mrb[0].mxu0 %v2572
    %v2647 = vpop.f32.mrb[0].mxu0
    %v2648 = vadd.f32 0.0, %v2647
    %v2649 = vpop.f32.mrb[0].mxu0
    %v2650 = vadd.f32 0.0, %v2649
    %2651 = vdwg.mxu0
    %v2652 = vld [vmem:[%s7] sm:$0xff]
    %v2653 = vld [vmem:[%s7 + $0x8] sm:$0xff]
    %v2654 = vld [vmem:[%s7 + $0x10] sm:$0xff]
    %v2655 = vld [vmem:[%s7 + $0x18] sm:$0xff]
    %v2656 = vld [vmem:[%s7 + $0x20] sm:$0xff]
    %v2657 = vld [vmem:[%s7 + $0x28] sm:$0xff]
    %v2658 = vld [vmem:[%s7 + $0x30] sm:$0xff]
    %v2659 = vld [vmem:[%s7 + $0x38] sm:$0xff]
    %v2660 = vld [vmem:[%s7 + $0x40] sm:$0xff]
    %v2661 = vld [vmem:[%s7 + $0x48] sm:$0xff]
    %v2662 = vld [vmem:[%s7 + $0x50] sm:$0xff]
    %v2663 = vld [vmem:[%s7 + $0x58] sm:$0xff]
    %v2664 = vld [vmem:[%s7 + $0x60] sm:$0xff]
    %v2665 = vld [vmem:[%s7 + $0x68] sm:$0xff]
    %v2666 = vld [vmem:[%s7 + $0x70] sm:$0xff]
    %v2667 = vld [vmem:[%s7 + $0x78] sm:$0xff]
    %v2668 = vld [vmem:[%s7 + $0x80] sm:$0xff]
    %v2669 = vld [vmem:[%s7 + $0x88] sm:$0xff]
    %v2670 = vld [vmem:[%s7 + $0x90] sm:$0x3f]
    %v2671 = vld [vmem:[%s8] sm:$0x1]
    %v2673 = vlaneseq
    %v2674 = vshrl.u32 %v2673, 7
    %v2675 = vsub.s32 0, %v2674
    %v2676 = vrot.slane %v2671, %v2675
    %vm2678 = vcmask 179200
    %v2680 = vsel %vm2678, %v2650, 0
    %v2683 = vsel %vm2574, %v2670, 0
    %2685 = vmatprep.subr.mxu0 0.0
    %2686 = vmatpush1.msra.mxu0 %v2652
    %2687 = vmatprep.subr.mxu0 0.0
    %2688 = vmatpush1.msra.mxu0 %v2653
    %2689 = vmatprep.subr.mxu0 0.0
    %2690 = vmatpush1.msra.mxu0 %v2654
    %2691 = vmatprep.subr.mxu0 0.0
    %2692 = vmatpush1.msra.mxu0 %v2655
    %2693 = vmatprep.subr.mxu0 0.0
    %2694 = vmatpush1.msra.mxu0 %v2656
    %2695 = vmatprep.subr.mxu0 0.0
    %2696 = vmatpush1.msra.mxu0 %v2657
    %2697 = vmatprep.subr.mxu0 0.0
    %2698 = vmatpush1.msra.mxu0 %v2658
    %2699 = vmatprep.subr.mxu0 0.0
    %2700 = vmatpush1.msra.mxu0 %v2659
    %2701 = vmatprep.subr.mxu0 0.0
    %2702 = vmatpush1.msra.mxu0 %v2660
    %2703 = vmatprep.subr.mxu0 0.0
    %2704 = vmatpush1.msra.mxu0 %v2661
    %2705 = vmatprep.subr.mxu0 0.0
    %2706 = vmatpush1.msra.mxu0 %v2662
    %2707 = vmatprep.subr.mxu0 0.0
    %2708 = vmatpush1.msra.mxu0 %v2663
    %2709 = vmatprep.subr.mxu0 0.0
    %2710 = vmatpush1.msra.mxu0 %v2664
    %2711 = vmatprep.subr.mxu0 0.0
    %2712 = vmatpush1.msra.mxu0 %v2665
    %2713 = vmatprep.subr.mxu0 0.0
    %2714 = vmatpush1.msra.mxu0 %v2666
    %2715 = vmatprep.subr.mxu0 0.0
    %2716 = vmatpush1.msra.mxu0 %v2667
    %2717 = vmatprep.subr.mxu0 0.0
    %2718 = vmatpush1.msra.mxu0 %v2668
    %2719 = vmatprep.subr.mxu0 0.0
    %2720 = vmatpush1.msra.mxu0 %v2669
    %2721 = vmatprep.subr.mxu0 0.0
    %2722 = vmatpush1.msra.mxu0 %v2683
    %2723 = vmatprep.subr.mxu0 0.0
    %2724 = vmatpush1.msra.mxu0 0.0
    %2725 = vmatprep.subr.mxu0 0.0
    %2726 = vmatpush1.msra.mxu0 0.0
    %2727 = vmatprep.subr.mxu0 0.0
    %2728 = vmatpush1.msra.mxu0 0.0
    %2729 = vmatprep.subr.mxu0 0.0
    %2730 = vmatpush1.msra.mxu0 0.0
    %2731 = vmatprep.subr.mxu0 0.0
    %2732 = vmatpush1.msra.mxu0 0.0
    %2733 = vmatprep.subr.mxu0 0.0
    %2734 = vmatpush1.msra.mxu0 0.0
    %2735 = vmatprep.subr.mxu0 0.0
    %2736 = vmatpush1.msra.mxu0 0.0
    %2737 = vmatprep.subr.mxu0 0.0
    %2738 = vmatpush1.msra.mxu0 0.0
    %2739 = vmatprep.subr.mxu0 0.0
    %2740 = vmatpush1.msra.mxu0 0.0
    %2741 = vmatprep.subr.mxu0 0.0
    %2742 = vmatpush1.msra.mxu0 0.0
    %2743 = vmatprep.subr.mxu0 0.0
    %2744 = vmatpush1.msra.mxu0 0.0
    %2745 = vmatprep.subr.mxu0 0.0
    %2746 = vmatpush1.msra.mxu0 0.0
    %2747 = vmatprep.subr.mxu0 0.0
    %2748 = vmatpush1.msra.mxu0 0.0
    %2749 = vmatprep.mubr.f32.mxu0 %v2680
    %2750 = vmatmul.mubr.f32.gmra.mrb[0].mxu0 %v2648
    %v2751 = vpop.f32.mrb[0].mxu0
    %v2752 = vadd.f32 %v2676, %v2751
    %v2753 = vpop.f32.mrb[0].mxu0
    %2754 = vdwg.mxu0
    %vm2755 = vcmask 74752
    %v2756 = vsel %vm2755, %v2752, -inf
    %2757 = vmax.xlane.f32.xlu0 %v2756
    %v2758 = vpop.xlane.xlu0 %2757
    %v2759 = vsub.f32 %v2752, %v2758
    %v2760 = vmul.f32 %v2759, 1.442695
    %v2761 = vpow.pop %v2760
    %v2762 = vsel %vm2755, %v2761, 0.0
    %2763 = vadd.xlane.f32.xlu0 %v2762
    %v2764 = vpop.xlane.xlu0 %2763
    %v2765 = vlog2.pop %v2764
    %v2766 = vmul.f32 %v2765, 0.6931472
    %v2767 = vsub.f32 %v2759, %v2766
    %2768 = vst.msk [vmem:[#allocation3] sm:$0x3] %vm2755, %v2767
    // Predicated region
    $region38: #{net_tgcn_forward.1} parent=1 // pred_check
      _
    $region39: #{net_tgcn_forward.1} parent=1 // pred_check_branch
      %2770 = sbr.rel (0) target = $region41
    $region40: #{net_tgcn_forward.1} parent=1 // pred_region
      %s2772 = ssub.s32 32, 32
      %2773 = vsyncadd [#allocation4], %s2772
      %s2775 = sshll.u32 [#allocation3], 4
      %s2776 = int_to_ptr.vmem [resolvable:$true] %s2775
      %2778 = dma.vmem_to_hbm [thread:$0]  %s2776, 32, %s9, [#allocation4]
    $region41: #{net_tgcn_forward.1} parent=1 // pred_fallthru
      _
    // Predicated region
    $region42: #{net_tgcn_forward.1} parent=1 // pred_check
      _
    $region43: #{net_tgcn_forward.1} parent=1 // pred_check_branch
      %2780 = sbr.rel (0) target = $region45
    $region44: #{net_tgcn_forward.1} parent=1 // pred_region
      %2781 = dma.done [#allocation4], 32
    $region45: #{net_tgcn_forward.1} parent=1 // pred_fallthru
      _
    %2782 = vsyncpa [#allocation4], 1

</llo_original>
